<compile_context>
chip_gen: v7x
topology: tpu7x:2x2x1
jax: 0.10.0
libtpu: 0.0.40
codegen_flags: <defaults>
</compile_context>

<pallas_src>
import functools
import math

import jax
import jax.numpy as jnp
from jax import lax
from jax.experimental import pallas as pl
from jax.experimental.pallas import tpu as pltpu


# ----------------------------------------------------------------------------
# Fused multi-head cross-attention kernel: single invocation, all batches.
# ----------------------------------------------------------------------------
def _fused_mha_kernel(q_ref, k_ref, v_ref,
                      wq_ref, wk_ref, wv_ref,
                      bq_ref, bk_ref, bv_ref,
                      wo_ref, bo_ref,
                      o_ref, *, num_heads, head_dim, batch, scale):
    f32 = jnp.float32
    H, Dh, N = num_heads, head_dim, batch

    # Batched input projections over all (seq, batch) rows at once.
    # PyTorch linear y = x @ W.T + b; W.T is hoisted into the wrapper.
    qp = jnp.dot(q_ref[...], wq_ref[...], preferred_element_type=f32) + bq_ref[...]
    kp = jnp.dot(k_ref[...], wk_ref[...], preferred_element_type=f32) + bk_ref[...]
    vp = jnp.dot(v_ref[...], wv_ref[...], preferred_element_type=f32) + bv_ref[...]

    LN = qp.shape[0]   # = L * N, row index = l * N + n   (row-major reshape)
    SN = kp.shape[0]   # = S * N, col index = s * N + n

    # Additive bias forbidding cross-batch attention: row l*N+n may only attend
    # to column s*N+n.  Built once with VPU iota/mod/select, reused by every
    # head.  This keeps all heads *and* batches inside a few dense matmuls
    # instead of a per-batch loop with strided slices (correct trade-off while
    # N is tiny; for large N a batch grid axis becomes the right structure).
    row_b = lax.broadcasted_iota(jnp.int32, (LN, SN), 0) % N
    col_b = lax.broadcasted_iota(jnp.int32, (LN, SN), 1) % N
    bias = jnp.where(row_b == col_b, 0.0, -1e30).astype(f32)

    # Per-head attention.  Dh (=8) is far below the 128-lane width, so heads
    # are cheap static lane slices; the output projection is hoisted out of
    # the loop (single MXU push over the concatenated context).
    ctx_heads = []
    for h in range(H):                       # static unroll, H is small
        lo = h * Dh
        qh = qp[:, lo:lo + Dh]               # (LN, Dh)
        kh = kp[:, lo:lo + Dh]               # (SN, Dh)
        vh = vp[:, lo:lo + Dh]               # (SN, Dh)

        # Scores: contract last dims of q and k (no explicit k.T / XLU transpose).
        s = lax.dot_general(qh, kh, (((1,), (1,)), ((), ())),
                            preferred_element_type=f32) * scale + bias  # (LN, SN)

        # Max-stabilized softmax in f32 with exact normalization.
        m = jnp.max(s, axis=-1, keepdims=True)
        p = jnp.exp(s - m)
        attn = p / jnp.sum(p, axis=-1, keepdims=True)

        ctx_heads.append(jnp.dot(attn, vh, preferred_element_type=f32))  # (LN, Dh)

    ctx = jnp.concatenate(ctx_heads, axis=-1)            # (LN, E) lane concat

    # Single output projection for all heads / batches / rows.
    out = jnp.dot(ctx, wo_ref[...], preferred_element_type=f32) + bo_ref[...]
    o_ref[...] = out.astype(o_ref.dtype)


# ----------------------------------------------------------------------------
# CrossAttention forward (nn.MultiheadAttention semantics, seq-first layout)
# ----------------------------------------------------------------------------
def cross_attention_forward(params, query, key, value, num_heads):
    """query: (L, N, E), key/value: (S, N, E) -> (L, N, E) float32."""
    L, N, E = query.shape
    S = key.shape[0]
    H = num_heads
    assert E % H == 0
    Dh = E // H
    scale = 1.0 / math.sqrt(Dh)
    f32 = jnp.float32

    in_w = params["in_proj_weight"]      # (3E, E)  (PyTorch layout)
    in_b = params["in_proj_bias"]        # (3E,)
    out_w = params["out_proj_weight"]    # (E, E)
    out_b = params["out_proj_bias"]      # (E,)

    # Hoisted once per call (a real module would store these pre-transposed).
    wq_t = in_w[:E].T.astype(f32)
    wk_t = in_w[E:2 * E].T.astype(f32)
    wv_t = in_w[2 * E:].T.astype(f32)
    wo_t = out_w.T.astype(f32)
    bq = in_b[:E].reshape(1, E).astype(f32)
    bk = in_b[E:2 * E].reshape(1, E).astype(f32)
    bv = in_b[2 * E:].reshape(1, E).astype(f32)
    bo = out_b.reshape(1, E).astype(f32)

    # Free contiguous (row-major) reshapes -- no HBM transposes anywhere.
    q2 = query.astype(f32).reshape(L * N, E)     # row = l*N + n
    k2 = key.astype(f32).reshape(S * N, E)
    v2 = value.astype(f32).reshape(S * N, E)

    kernel = functools.partial(_fused_mha_kernel, num_heads=H, head_dim=Dh,
                               batch=N, scale=scale)

    vmem = pl.BlockSpec(memory_space=pltpu.MemorySpace.VMEM)  # full-array blocks

    # Single invocation (no grid): at these shapes the whole problem fits in a
    # few vregs, so any per-grid-step pipeline overhead would dominate.
    out2 = pl.pallas_call(
        kernel,
        out_shape=jax.ShapeDtypeStruct((L * N, E), jnp.float32),
        in_specs=[vmem] * 11,
        out_specs=vmem,
    )(q2, k2, v2, wq_t, wk_t, wv_t, bq, bk, bv, wo_t, bo)

    return out2.reshape(L, N, E)   # free reshape back to seq-first layout


# ----------------------------------------------------------------------------
# Pure-JAX reference (same math) for correctness check
# ----------------------------------------------------------------------------
def reference_forward(params, query, key, value, num_heads):
    L, N, E = query.shape
    S = key.shape[0]
    H = num_heads
    Dh = E // H
    in_w, in_b = params["in_proj_weight"], params["in_proj_bias"]
    out_w, out_b = params["out_proj_weight"], params["out_proj_bias"]
    wq, wk, wv = in_w[:E], in_w[E:2 * E], in_w[2 * E:]
    bq, bk, bv = in_b[:E], in_b[E:2 * E], in_b[2 * E:]
    q = (query @ wq.T + bq).reshape(L, N, H, Dh).transpose(1, 2, 0, 3)
    k = (key @ wk.T + bk).reshape(S, N, H, Dh).transpose(1, 2, 0, 3)
    v = (value @ wv.T + bv).reshape(S, N, H, Dh).transpose(1, 2, 0, 3)
    s = jnp.einsum("bhld,bhsd->bhls", q, k) / jnp.sqrt(jnp.float32(Dh))
    p = jax.nn.softmax(s, axis=-1)
    ctx = jnp.einsum("bhls,bhsd->bhld", p, v)
    ctx = ctx.transpose(2, 0, 1, 3).reshape(L, N, E)
    return ctx @ out_w.T + out_b


# ----------------------------------------------------------------------------
def init_params(key, d_model):
    k1, k2 = jax.random.split(key)
    limit_in = (6.0 / (3 * d_model + d_model)) ** 0.5
    in_proj_weight = jax.random.uniform(
        k1, (3 * d_model, d_model), jnp.float32, -limit_in, limit_in
    )
    in_proj_bias = jnp.zeros((3 * d_model,), jnp.float32)
    limit_out = (1.0 / d_model) ** 0.5
    out_proj_weight = jax.random.uniform(
        k2, (d_model, d_model), jnp.float32, -limit_out, limit_out
    )
    out_proj_bias = jnp.zeros((d_model,), jnp.float32)
    return {
        "in_proj_weight": in_proj_weight,
        "in_proj_bias": in_proj_bias,
        "out_proj_weight": out_proj_weight,
        "out_proj_bias": out_proj_bias,
    }


if __name__ == "__main__":
    d_model = 32
    num_heads = 4
    L, S, N = 8, 8, 2  # target-seq, source-seq, batch

    root = jax.random.PRNGKey(0)
    kp, kq, kk, kv = jax.random.split(root, 4)
    params = init_params(kp, d_model)

    query = jax.random.normal(kq, (L, N, d_model), jnp.float32)
    key = jax.random.normal(kk, (S, N, d_model), jnp.float32)
    value = jax.random.normal(kv, (S, N, d_model), jnp.float32)

    ref = reference_forward(params, query, key, value, num_heads)

    out = cross_attention_forward(params, query, key, value, num_heads)
    out = jax.block_until_ready(out)
    assert out.shape == (L, N, d_model)
    # Softmax is exact (no approx reciprocal); remaining tolerance only covers
    # TPU default matmul-precision differences between Mosaic and the XLA ref.
    assert jnp.allclose(out, ref, atol=5e-3, rtol=5e-3), "mismatch vs reference"

    print("KERNEL_OK")
</pallas_src>

<mosaic_0001>
module attributes {stable_mosaic.version = 11 : i64} {
  func.func @_fused_mha_kernel(%arg0: memref<16x32xf32, #tpu.memory_space<vmem>>, %arg1: memref<16x32xf32, #tpu.memory_space<vmem>>, %arg2: memref<16x32xf32, #tpu.memory_space<vmem>>, %arg3: memref<32x32xf32, #tpu.memory_space<vmem>>, %arg4: memref<32x32xf32, #tpu.memory_space<vmem>>, %arg5: memref<32x32xf32, #tpu.memory_space<vmem>>, %arg6: memref<1x32xf32, #tpu.memory_space<vmem>>, %arg7: memref<1x32xf32, #tpu.memory_space<vmem>>, %arg8: memref<1x32xf32, #tpu.memory_space<vmem>>, %arg9: memref<32x32xf32, #tpu.memory_space<vmem>>, %arg10: memref<1x32xf32, #tpu.memory_space<vmem>>, %arg11: memref<16x32xf32, #tpu.memory_space<vmem>>) attributes {dimension_semantics = [], scalar_prefetch = 0 : i64, scratch_operands = 0 : i64, tpu.core_type = #tpu.core_type<tc>} {
    %c0 = arith.constant 0 : index
    %c0_0 = arith.constant 0 : index
    %0 = vector.load %arg0[%c0, %c0_0] : memref<16x32xf32, #tpu.memory_space<vmem>>, vector<16x32xf32>
    %c0_1 = arith.constant 0 : index
    %c0_2 = arith.constant 0 : index
    %1 = vector.load %arg3[%c0_1, %c0_2] : memref<32x32xf32, #tpu.memory_space<vmem>>, vector<32x32xf32>
    %cst = arith.constant dense<0.000000e+00> : vector<16x32xf32>
    %2 = tpu.matmul %0, %1, %cst {dimension_numbers = #tpu.dot_dimension_numbers<[1], [0], [0], [1], [0, 0, 1, 1], [], []>} : vector<16x32xf32>, vector<32x32xf32>, vector<16x32xf32> -> vector<16x32xf32>
    %c0_3 = arith.constant 0 : index
    %c0_4 = arith.constant 0 : index
    %3 = vector.load %arg6[%c0_3, %c0_4] : memref<1x32xf32, #tpu.memory_space<vmem>>, vector<1x32xf32>
    %4 = vector.broadcast %3 : vector<1x32xf32> to vector<16x32xf32>
    %5 = arith.addf %2, %4 : vector<16x32xf32>
    %c0_5 = arith.constant 0 : index
    %c0_6 = arith.constant 0 : index
    %6 = vector.load %arg1[%c0_5, %c0_6] : memref<16x32xf32, #tpu.memory_space<vmem>>, vector<16x32xf32>
    %c0_7 = arith.constant 0 : index
    %c0_8 = arith.constant 0 : index
    %7 = vector.load %arg4[%c0_7, %c0_8] : memref<32x32xf32, #tpu.memory_space<vmem>>, vector<32x32xf32>
    %cst_9 = arith.constant dense<0.000000e+00> : vector<16x32xf32>
    %8 = tpu.matmul %6, %7, %cst_9 {dimension_numbers = #tpu.dot_dimension_numbers<[1], [0], [0], [1], [0, 0, 1, 1], [], []>} : vector<16x32xf32>, vector<32x32xf32>, vector<16x32xf32> -> vector<16x32xf32>
    %c0_10 = arith.constant 0 : index
    %c0_11 = arith.constant 0 : index
    %9 = vector.load %arg7[%c0_10, %c0_11] : memref<1x32xf32, #tpu.memory_space<vmem>>, vector<1x32xf32>
    %10 = vector.broadcast %9 : vector<1x32xf32> to vector<16x32xf32>
    %11 = arith.addf %8, %10 : vector<16x32xf32>
    %c0_12 = arith.constant 0 : index
    %c0_13 = arith.constant 0 : index
    %12 = vector.load %arg2[%c0_12, %c0_13] : memref<16x32xf32, #tpu.memory_space<vmem>>, vector<16x32xf32>
    %c0_14 = arith.constant 0 : index
    %c0_15 = arith.constant 0 : index
    %13 = vector.load %arg5[%c0_14, %c0_15] : memref<32x32xf32, #tpu.memory_space<vmem>>, vector<32x32xf32>
    %cst_16 = arith.constant dense<0.000000e+00> : vector<16x32xf32>
    %14 = tpu.matmul %12, %13, %cst_16 {dimension_numbers = #tpu.dot_dimension_numbers<[1], [0], [0], [1], [0, 0, 1, 1], [], []>} : vector<16x32xf32>, vector<32x32xf32>, vector<16x32xf32> -> vector<16x32xf32>
    %c0_17 = arith.constant 0 : index
    %c0_18 = arith.constant 0 : index
    %15 = vector.load %arg8[%c0_17, %c0_18] : memref<1x32xf32, #tpu.memory_space<vmem>>, vector<1x32xf32>
    %16 = vector.broadcast %15 : vector<1x32xf32> to vector<16x32xf32>
    %17 = arith.addf %14, %16 : vector<16x32xf32>
    %18 = tpu.iota {dimensions = array<i32: 0>} : vector<16x16xi32>
    %c2_i32 = arith.constant 2 : i32
    %c0_i32 = arith.constant 0 : i32
    %19 = arith.cmpi eq, %c2_i32, %c0_i32 : i32
    %c1_i32 = arith.constant 1 : i32
    %20 = arith.select %19, %c1_i32, %c2_i32 : i32
    %21 = vector.broadcast %20 : i32 to vector<16x16xi32>
    %22 = arith.remsi %18, %21 : vector<16x16xi32>
    %c0_i32_19 = arith.constant 0 : i32
    %23 = vector.broadcast %c0_i32_19 : i32 to vector<16x16xi32>
    %24 = arith.cmpi ne, %22, %23 : vector<16x16xi32>
    %c0_i32_20 = arith.constant 0 : i32
    %25 = vector.broadcast %c0_i32_20 : i32 to vector<16x16xi32>
    %26 = arith.cmpi slt, %22, %25 : vector<16x16xi32>
    %c0_i32_21 = arith.constant 0 : i32
    %27 = arith.cmpi slt, %20, %c0_i32_21 : i32
    %28 = vector.broadcast %27 : i1 to vector<16x16xi1>
    %29 = vector.broadcast %28 : vector<16x16xi1> to vector<16x16xi1>
    %30 = arith.xori %26, %29 : vector<16x16xi1>
    %31 = arith.andi %30, %24 : vector<16x16xi1>
    %32 = vector.broadcast %20 : i32 to vector<16x16xi32>
    %33 = arith.addi %22, %32 : vector<16x16xi32>
    %34 = arith.select %31, %33, %22 : vector<16x16xi1>, vector<16x16xi32>
    %35 = tpu.iota {dimensions = array<i32: 1>} : vector<16x16xi32>
    %c2_i32_22 = arith.constant 2 : i32
    %c0_i32_23 = arith.constant 0 : i32
    %36 = arith.cmpi eq, %c2_i32_22, %c0_i32_23 : i32
    %c1_i32_24 = arith.constant 1 : i32
    %37 = arith.select %36, %c1_i32_24, %c2_i32_22 : i32
    %38 = vector.broadcast %37 : i32 to vector<16x16xi32>
    %39 = arith.remsi %35, %38 : vector<16x16xi32>
    %c0_i32_25 = arith.constant 0 : i32
    %40 = vector.broadcast %c0_i32_25 : i32 to vector<16x16xi32>
    %41 = arith.cmpi ne, %39, %40 : vector<16x16xi32>
    %c0_i32_26 = arith.constant 0 : i32
    %42 = vector.broadcast %c0_i32_26 : i32 to vector<16x16xi32>
    %43 = arith.cmpi slt, %39, %42 : vector<16x16xi32>
    %c0_i32_27 = arith.constant 0 : i32
    %44 = arith.cmpi slt, %37, %c0_i32_27 : i32
    %45 = vector.broadcast %44 : i1 to vector<16x16xi1>
    %46 = vector.broadcast %45 : vector<16x16xi1> to vector<16x16xi1>
    %47 = arith.xori %43, %46 : vector<16x16xi1>
    %48 = arith.andi %47, %41 : vector<16x16xi1>
    %49 = vector.broadcast %37 : i32 to vector<16x16xi32>
    %50 = arith.addi %39, %49 : vector<16x16xi32>
    %51 = arith.select %48, %50, %39 : vector<16x16xi1>, vector<16x16xi32>
    %52 = arith.cmpi eq, %34, %51 : vector<16x16xi32>
    %cst_28 = arith.constant 0.000000e+00 : f32
    %cst_29 = arith.constant -1.000000e+30 : f32
    %53 = vector.broadcast %cst_28 : f32 to vector<16x16xf32>
    %54 = vector.broadcast %cst_29 : f32 to vector<16x16xf32>
    %55 = arith.select %52, %53, %54 : vector<16x16xi1>, vector<16x16xf32>
    %56 = vector.extract_strided_slice %5 {offsets = [0, 0], sizes = [16, 8], strides = [1, 1]} : vector<16x32xf32> to vector<16x8xf32>
    %57 = vector.extract_strided_slice %11 {offsets = [0, 0], sizes = [16, 8], strides = [1, 1]} : vector<16x32xf32> to vector<16x8xf32>
    %58 = vector.extract_strided_slice %17 {offsets = [0, 0], sizes = [16, 8], strides = [1, 1]} : vector<16x32xf32> to vector<16x8xf32>
    %cst_30 = arith.constant dense<0.000000e+00> : vector<16x16xf32>
    %59 = tpu.matmul %56, %57, %cst_30 {dimension_numbers = #tpu.dot_dimension_numbers<[1], [1], [0], [0], [0, 0, 1, 0], [], []>} : vector<16x8xf32>, vector<16x8xf32>, vector<16x16xf32> -> vector<16x16xf32>
    %cst_31 = arith.constant 0.353553385 : f32
    %60 = vector.broadcast %cst_31 : f32 to vector<16x16xf32>
    %61 = arith.mulf %59, %60 : vector<16x16xf32>
    %62 = arith.addf %61, %55 : vector<16x16xf32>
    %cst_32 = arith.constant dense<0xFF800000> : vector<16xf32>
    %63 = vector.multi_reduction <maximumf>, %62, %cst_32 [1] : vector<16x16xf32> to vector<16xf32>
    %64 = vector.shape_cast %63 : vector<16xf32> to vector<16x1xf32>
    %65 = vector.broadcast %64 : vector<16x1xf32> to vector<16x16xf32>
    %66 = arith.subf %62, %65 : vector<16x16xf32>
    %67 = math.exp %66 : vector<16x16xf32>
    %cst_33 = arith.constant dense<0.000000e+00> : vector<16xf32>
    %68 = vector.multi_reduction <add>, %67, %cst_33 [1] : vector<16x16xf32> to vector<16xf32>
    %69 = vector.shape_cast %68 : vector<16xf32> to vector<16x1xf32>
    %70 = vector.broadcast %69 : vector<16x1xf32> to vector<16x16xf32>
    %71 = arith.divf %67, %70 : vector<16x16xf32>
    %cst_34 = arith.constant dense<0.000000e+00> : vector<16x8xf32>
    %72 = tpu.matmul %71, %58, %cst_34 {dimension_numbers = #tpu.dot_dimension_numbers<[1], [0], [0], [1], [0, 0, 1, 1], [], []>} : vector<16x16xf32>, vector<16x8xf32>, vector<16x8xf32> -> vector<16x8xf32>
    %73 = vector.extract_strided_slice %5 {offsets = [0, 8], sizes = [16, 8], strides = [1, 1]} : vector<16x32xf32> to vector<16x8xf32>
    %74 = vector.extract_strided_slice %11 {offsets = [0, 8], sizes = [16, 8], strides = [1, 1]} : vector<16x32xf32> to vector<16x8xf32>
    %75 = vector.extract_strided_slice %17 {offsets = [0, 8], sizes = [16, 8], strides = [1, 1]} : vector<16x32xf32> to vector<16x8xf32>
    %cst_35 = arith.constant dense<0.000000e+00> : vector<16x16xf32>
    %76 = tpu.matmul %73, %74, %cst_35 {dimension_numbers = #tpu.dot_dimension_numbers<[1], [1], [0], [0], [0, 0, 1, 0], [], []>} : vector<16x8xf32>, vector<16x8xf32>, vector<16x16xf32> -> vector<16x16xf32>
    %cst_36 = arith.constant 0.353553385 : f32
    %77 = vector.broadcast %cst_36 : f32 to vector<16x16xf32>
    %78 = arith.mulf %76, %77 : vector<16x16xf32>
    %79 = arith.addf %78, %55 : vector<16x16xf32>
    %cst_37 = arith.constant dense<0xFF800000> : vector<16xf32>
    %80 = vector.multi_reduction <maximumf>, %79, %cst_37 [1] : vector<16x16xf32> to vector<16xf32>
    %81 = vector.shape_cast %80 : vector<16xf32> to vector<16x1xf32>
    %82 = vector.broadcast %81 : vector<16x1xf32> to vector<16x16xf32>
    %83 = arith.subf %79, %82 : vector<16x16xf32>
    %84 = math.exp %83 : vector<16x16xf32>
    %cst_38 = arith.constant dense<0.000000e+00> : vector<16xf32>
    %85 = vector.multi_reduction <add>, %84, %cst_38 [1] : vector<16x16xf32> to vector<16xf32>
    %86 = vector.shape_cast %85 : vector<16xf32> to vector<16x1xf32>
    %87 = vector.broadcast %86 : vector<16x1xf32> to vector<16x16xf32>
    %88 = arith.divf %84, %87 : vector<16x16xf32>
    %cst_39 = arith.constant dense<0.000000e+00> : vector<16x8xf32>
    %89 = tpu.matmul %88, %75, %cst_39 {dimension_numbers = #tpu.dot_dimension_numbers<[1], [0], [0], [1], [0, 0, 1, 1], [], []>} : vector<16x16xf32>, vector<16x8xf32>, vector<16x8xf32> -> vector<16x8xf32>
    %90 = vector.extract_strided_slice %5 {offsets = [0, 16], sizes = [16, 8], strides = [1, 1]} : vector<16x32xf32> to vector<16x8xf32>
    %91 = vector.extract_strided_slice %11 {offsets = [0, 16], sizes = [16, 8], strides = [1, 1]} : vector<16x32xf32> to vector<16x8xf32>
    %92 = vector.extract_strided_slice %17 {offsets = [0, 16], sizes = [16, 8], strides = [1, 1]} : vector<16x32xf32> to vector<16x8xf32>
    %cst_40 = arith.constant dense<0.000000e+00> : vector<16x16xf32>
    %93 = tpu.matmul %90, %91, %cst_40 {dimension_numbers = #tpu.dot_dimension_numbers<[1], [1], [0], [0], [0, 0, 1, 0], [], []>} : vector<16x8xf32>, vector<16x8xf32>, vector<16x16xf32> -> vector<16x16xf32>
    %cst_41 = arith.constant 0.353553385 : f32
    %94 = vector.broadcast %cst_41 : f32 to vector<16x16xf32>
    %95 = arith.mulf %93, %94 : vector<16x16xf32>
    %96 = arith.addf %95, %55 : vector<16x16xf32>
    %cst_42 = arith.constant dense<0xFF800000> : vector<16xf32>
    %97 = vector.multi_reduction <maximumf>, %96, %cst_42 [1] : vector<16x16xf32> to vector<16xf32>
    %98 = vector.shape_cast %97 : vector<16xf32> to vector<16x1xf32>
    %99 = vector.broadcast %98 : vector<16x1xf32> to vector<16x16xf32>
    %100 = arith.subf %96, %99 : vector<16x16xf32>
    %101 = math.exp %100 : vector<16x16xf32>
    %cst_43 = arith.constant dense<0.000000e+00> : vector<16xf32>
    %102 = vector.multi_reduction <add>, %101, %cst_43 [1] : vector<16x16xf32> to vector<16xf32>
    %103 = vector.shape_cast %102 : vector<16xf32> to vector<16x1xf32>
    %104 = vector.broadcast %103 : vector<16x1xf32> to vector<16x16xf32>
    %105 = arith.divf %101, %104 : vector<16x16xf32>
    %cst_44 = arith.constant dense<0.000000e+00> : vector<16x8xf32>
    %106 = tpu.matmul %105, %92, %cst_44 {dimension_numbers = #tpu.dot_dimension_numbers<[1], [0], [0], [1], [0, 0, 1, 1], [], []>} : vector<16x16xf32>, vector<16x8xf32>, vector<16x8xf32> -> vector<16x8xf32>
    %107 = vector.extract_strided_slice %5 {offsets = [0, 24], sizes = [16, 8], strides = [1, 1]} : vector<16x32xf32> to vector<16x8xf32>
    %108 = vector.extract_strided_slice %11 {offsets = [0, 24], sizes = [16, 8], strides = [1, 1]} : vector<16x32xf32> to vector<16x8xf32>
    %109 = vector.extract_strided_slice %17 {offsets = [0, 24], sizes = [16, 8], strides = [1, 1]} : vector<16x32xf32> to vector<16x8xf32>
    %cst_45 = arith.constant dense<0.000000e+00> : vector<16x16xf32>
    %110 = tpu.matmul %107, %108, %cst_45 {dimension_numbers = #tpu.dot_dimension_numbers<[1], [1], [0], [0], [0, 0, 1, 0], [], []>} : vector<16x8xf32>, vector<16x8xf32>, vector<16x16xf32> -> vector<16x16xf32>
    %cst_46 = arith.constant 0.353553385 : f32
    %111 = vector.broadcast %cst_46 : f32 to vector<16x16xf32>
    %112 = arith.mulf %110, %111 : vector<16x16xf32>
    %113 = arith.addf %112, %55 : vector<16x16xf32>
    %cst_47 = arith.constant dense<0xFF800000> : vector<16xf32>
    %114 = vector.multi_reduction <maximumf>, %113, %cst_47 [1] : vector<16x16xf32> to vector<16xf32>
    %115 = vector.shape_cast %114 : vector<16xf32> to vector<16x1xf32>
    %116 = vector.broadcast %115 : vector<16x1xf32> to vector<16x16xf32>
    %117 = arith.subf %113, %116 : vector<16x16xf32>
    %118 = math.exp %117 : vector<16x16xf32>
    %cst_48 = arith.constant dense<0.000000e+00> : vector<16xf32>
    %119 = vector.multi_reduction <add>, %118, %cst_48 [1] : vector<16x16xf32> to vector<16xf32>
    %120 = vector.shape_cast %119 : vector<16xf32> to vector<16x1xf32>
    %121 = vector.broadcast %120 : vector<16x1xf32> to vector<16x16xf32>
    %122 = arith.divf %118, %121 : vector<16x16xf32>
    %cst_49 = arith.constant dense<0.000000e+00> : vector<16x8xf32>
    %123 = tpu.matmul %122, %109, %cst_49 {dimension_numbers = #tpu.dot_dimension_numbers<[1], [0], [0], [1], [0, 0, 1, 1], [], []>} : vector<16x16xf32>, vector<16x8xf32>, vector<16x8xf32> -> vector<16x8xf32>
    %124 = tpu.concatenate %72, %89, %106, %123 in 1 : vector<16x8xf32>, vector<16x8xf32>, vector<16x8xf32>, vector<16x8xf32> -> vector<16x32xf32>
    %c0_50 = arith.constant 0 : index
    %c0_51 = arith.constant 0 : index
    %125 = vector.load %arg9[%c0_50, %c0_51] : memref<32x32xf32, #tpu.memory_space<vmem>>, vector<32x32xf32>
    %cst_52 = arith.constant dense<0.000000e+00> : vector<16x32xf32>
    %126 = tpu.matmul %124, %125, %cst_52 {dimension_numbers = #tpu.dot_dimension_numbers<[1], [0], [0], [1], [0, 0, 1, 1], [], []>} : vector<16x32xf32>, vector<32x32xf32>, vector<16x32xf32> -> vector<16x32xf32>
    %c0_53 = arith.constant 0 : index
    %c0_54 = arith.constant 0 : index
    %127 = vector.load %arg10[%c0_53, %c0_54] : memref<1x32xf32, #tpu.memory_space<vmem>>, vector<1x32xf32>
    %128 = vector.broadcast %127 : vector<1x32xf32> to vector<16x32xf32>
    %129 = arith.addf %126, %128 : vector<16x32xf32>
    %c0_55 = arith.constant 0 : index
    %c0_56 = arith.constant 0 : index
    %130 = vector.load %arg11[%c0_55, %c0_56] : memref<16x32xf32, #tpu.memory_space<vmem>>, vector<16x32xf32>
    tpu.vector_store %arg11[%c0_55, %c0_56], %129 {strides = array<i32>} : memref<16x32xf32, #tpu.memory_space<vmem>>, vector<16x32xf32>,
    return
  }
}

</mosaic_0001>

<llo_original>
// kernel: tpu_custom_call.1
$region0: #{tpu_custom_call.1}
  #allocation0 [shape = 'u32[]', space=smem, size = 0x4, offset = 0x4, fixed_abs, tag = 'smem constant byte address 0x4 - core index']
  #allocation1 [shape = 'u32[144,128]{1,0:T(1,128)}', space=vmem, size = 0x12000, scoped, tag = 'internal scratch']
  %s0 = inlined_call_operand.hbm [shape: f32[16,32], index: 0, kind: input, shape index: {}]
  %s1 = inlined_call_operand.hbm [shape: f32[16,32], index: 1, kind: input, shape index: {}]
  %s2 = inlined_call_operand.hbm [shape: f32[16,32], index: 2, kind: input, shape index: {}]
  %s3 = inlined_call_operand.hbm [shape: f32[32,32], index: 3, kind: input, shape index: {}]
  %s4 = inlined_call_operand.hbm [shape: f32[32,32], index: 4, kind: input, shape index: {}]
  %s5 = inlined_call_operand.hbm [shape: f32[32,32], index: 5, kind: input, shape index: {}]
  %s6 = inlined_call_operand.vmem [shape: f32[1,32], index: 6, kind: input, shape index: {}]
  %s7 = inlined_call_operand.vmem [shape: f32[1,32], index: 7, kind: input, shape index: {}]
  %s8 = inlined_call_operand.hbm [shape: f32[1,32], index: 8, kind: input, shape index: {}]
  %s9 = inlined_call_operand.vmem [shape: f32[32,32], index: 9, kind: input, shape index: {}]
  %s10 = inlined_call_operand.vmem [shape: f32[1,32], index: 10, kind: input, shape index: {}]
  %s11 = inlined_call_operand.hbm [shape: f32[16,32], index: 11, kind: output, shape index: {}]
  %s12 = sld [smem:[#allocation0]]
  $region82: #{tpu_custom_call.1} parent=0
    _
  %s14 = ssub.s32 1, %s12
  %s15 = scalar_select 0, %s14, %s12
  $region1: #{tpu_custom_call.1} parent=0
    #allocation2 [shape = 'u8[8192]{0}', space=vmem, size = 0x2000, scoped, tag = 'input window, operand 0, single buffered']
    #allocation3 [shape = 's32[1]{0}', space=sflag, size = 0x4, scoped, tag = 'scoped memory for tpu_custom_call.1']
    #allocation4 [shape = 's32[1]{0}', space=sflag, size = 0x4, scoped, tag = 'scoped memory for tpu_custom_call.1']
    #allocation5 [shape = 'u8[8192]{0}', space=vmem, size = 0x2000, scoped, tag = 'input window, operand 1, single buffered']
    #allocation6 [shape = 's32[1]{0}', space=sflag, size = 0x4, scoped, tag = 'scoped memory for tpu_custom_call.1']
    #allocation7 [shape = 'u8[8192]{0}', space=vmem, size = 0x2000, scoped, tag = 'input window, operand 2, single buffered']
    #allocation8 [shape = 'u8[16384]{0}', space=vmem, size = 0x4000, scoped, tag = 'input window, operand 3, single buffered']
    #allocation9 [shape = 's32[1]{0}', space=sflag, size = 0x4, scoped, tag = 'scoped memory for tpu_custom_call.1']
    #allocation10 [shape = 'u8[16384]{0}', space=vmem, size = 0x4000, scoped, tag = 'input window, operand 4, single buffered']
    #allocation11 [shape = 'u8[16384]{0}', space=vmem, size = 0x4000, scoped, tag = 'input window, operand 5, single buffered']
    #allocation12 [shape = 's32[1]{0}', space=sflag, size = 0x4, scoped, tag = 'scoped memory for tpu_custom_call.1']
    #allocation13 [shape = 'u8[512]{0}', space=vmem, size = 0x400, scoped, tag = 'input window, operand 8, single buffered']
    #allocation14 [shape = 'u8[8192]{0}', space=vmem, size = 0x2000, scoped, tag = 'output window, operand 0, single buffered']
    %16 = vsyncpa [#allocation3], 0
    %17 = vsyncpa [#allocation6], 0
    %18 = vsyncpa [#allocation9], 0
    %19 = vsyncpa [#allocation12], 0
    %20 = vsyncpa [#allocation4], 0
    // Predicated region
    $region2: #{tpu_custom_call.1} parent=1 // pred_check
      _
    $region3: #{tpu_custom_call.1} parent=1 // pred_check_branch
      %22 = sbr.rel (0) target = $region5
    $region4: #{tpu_custom_call.1} parent=1 // pred_region
      %s24 = ssub.s32 256, 256
      %25 = vsyncadd [#allocation3], %s24
      %s26 = sshll.u32 [#allocation2], 4
      %s27 = int_to_ptr.vmem [resolvable:$true] %s26
      %32 = dma.hbm_to_vmem [thread:$0]  %s0, 256, %s27, [#allocation3], 128, 128, 8
    $region5: #{tpu_custom_call.1} parent=1 // pred_fallthru
      _
    // Predicated region
    $region6: #{tpu_custom_call.1} parent=1 // pred_check
      _
    $region7: #{tpu_custom_call.1} parent=1 // pred_check_branch
      %34 = sbr.rel (0) target = $region9
    $region8: #{tpu_custom_call.1} parent=1 // pred_region
      %s36 = ssub.s32 256, 256
      %37 = vsyncadd [#allocation6], %s36
      %s38 = sshll.u32 [#allocation5], 4
      %s39 = int_to_ptr.vmem [resolvable:$true] %s38
      %44 = dma.hbm_to_vmem [thread:$0]  %s1, 256, %s39, [#allocation6], 128, 128, 8
    $region9: #{tpu_custom_call.1} parent=1 // pred_fallthru
      _
    // Predicated region
    $region10: #{tpu_custom_call.1} parent=1 // pred_check
      _
    $region11: #{tpu_custom_call.1} parent=1 // pred_check_branch
      %46 = sbr.rel (0) target = $region13
    $region12: #{tpu_custom_call.1} parent=1 // pred_region
      %s48 = ssub.s32 256, 256
      %49 = vsyncadd [#allocation6], %s48
      %s50 = sshll.u32 [#allocation7], 4
      %s51 = int_to_ptr.vmem [resolvable:$true] %s50
      %56 = dma.hbm_to_vmem [thread:$0]  %s2, 256, %s51, [#allocation6], 128, 128, 8
    $region13: #{tpu_custom_call.1} parent=1 // pred_fallthru
      _
    // Predicated region
    $region14: #{tpu_custom_call.1} parent=1 // pred_check
      _
    $region15: #{tpu_custom_call.1} parent=1 // pred_check_branch
      %58 = sbr.rel (0) target = $region17
    $region16: #{tpu_custom_call.1} parent=1 // pred_region
      %s60 = ssub.s32 512, 512
      %61 = vsyncadd [#allocation9], %s60
      %s62 = sshll.u32 [#allocation8], 4
      %s63 = int_to_ptr.vmem [resolvable:$true] %s62
      %68 = dma.hbm_to_vmem [thread:$0]  %s3, 512, %s63, [#allocation9], 128, 128, 8
    $region17: #{tpu_custom_call.1} parent=1 // pred_fallthru
      _
    // Predicated region
    $region18: #{tpu_custom_call.1} parent=1 // pred_check
      _
    $region19: #{tpu_custom_call.1} parent=1 // pred_check_branch
      %70 = sbr.rel (0) target = $region21
    $region20: #{tpu_custom_call.1} parent=1 // pred_region
      %s72 = ssub.s32 512, 512
      %73 = vsyncadd [#allocation9], %s72
      %s74 = sshll.u32 [#allocation10], 4
      %s75 = int_to_ptr.vmem [resolvable:$true] %s74
      %80 = dma.hbm_to_vmem [thread:$0]  %s4, 512, %s75, [#allocation9], 128, 128, 8
    $region21: #{tpu_custom_call.1} parent=1 // pred_fallthru
      _
    // Predicated region
    $region22: #{tpu_custom_call.1} parent=1 // pred_check
      _
    $region23: #{tpu_custom_call.1} parent=1 // pred_check_branch
      %82 = sbr.rel (0) target = $region25
    $region24: #{tpu_custom_call.1} parent=1 // pred_region
      %s84 = ssub.s32 512, 512
      %85 = vsyncadd [#allocation12], %s84
      %s86 = sshll.u32 [#allocation11], 4
      %s87 = int_to_ptr.vmem [resolvable:$true] %s86
      %92 = dma.hbm_to_vmem [thread:$0]  %s5, 512, %s87, [#allocation12], 128, 128, 8
    $region25: #{tpu_custom_call.1} parent=1 // pred_fallthru
      _
    // Predicated region
    $region26: #{tpu_custom_call.1} parent=1 // pred_check
      _
    $region27: #{tpu_custom_call.1} parent=1 // pred_check_branch
      %94 = sbr.rel (0) target = $region29
    $region28: #{tpu_custom_call.1} parent=1 // pred_region
      _
    $region29: #{tpu_custom_call.1} parent=1 // pred_fallthru
      _
    // Predicated region
    $region30: #{tpu_custom_call.1} parent=1 // pred_check
      _
    $region31: #{tpu_custom_call.1} parent=1 // pred_check_branch
      %96 = sbr.rel (0) target = $region33
    $region32: #{tpu_custom_call.1} parent=1 // pred_region
      _
    $region33: #{tpu_custom_call.1} parent=1 // pred_fallthru
      _
    // Predicated region
    $region34: #{tpu_custom_call.1} parent=1 // pred_check
      _
    $region35: #{tpu_custom_call.1} parent=1 // pred_check_branch
      %98 = sbr.rel (0) target = $region37
    $region36: #{tpu_custom_call.1} parent=1 // pred_region
      %s100 = ssub.s32 16, 16
      %101 = vsyncadd [#allocation12], %s100
      %s103 = sshll.u32 [#allocation13], 4
      %s104 = int_to_ptr.vmem [resolvable:$true] %s103
      %106 = dma.hbm_to_vmem [thread:$0]  %s8, 16, %s104, [#allocation12]
    $region37: #{tpu_custom_call.1} parent=1 // pred_fallthru
      _
    // Predicated region
    $region38: #{tpu_custom_call.1} parent=1 // pred_check
      _
    $region39: #{tpu_custom_call.1} parent=1 // pred_check_branch
      %108 = sbr.rel (0) target = $region41
    $region40: #{tpu_custom_call.1} parent=1 // pred_region
      _
    $region41: #{tpu_custom_call.1} parent=1 // pred_fallthru
      _
    // Predicated region
    $region42: #{tpu_custom_call.1} parent=1 // pred_check
      _
    $region43: #{tpu_custom_call.1} parent=1 // pred_check_branch
      %110 = sbr.rel (0) target = $region45
    $region44: #{tpu_custom_call.1} parent=1 // pred_region
      _
    $region45: #{tpu_custom_call.1} parent=1 // pred_fallthru
      _
    // Predicated region
    $region46: #{tpu_custom_call.1} parent=1 // pred_check
      _
    $region47: #{tpu_custom_call.1} parent=1 // pred_check_branch
      %112 = sbr.rel (0) target = $region49
    $region48: #{tpu_custom_call.1} parent=1 // pred_region
      %113 = dma.done [#allocation3], 256
    $region49: #{tpu_custom_call.1} parent=1 // pred_fallthru
      _
    // Predicated region
    $region50: #{tpu_custom_call.1} parent=1 // pred_check
      _
    $region51: #{tpu_custom_call.1} parent=1 // pred_check_branch
      %115 = sbr.rel (0) target = $region53
    $region52: #{tpu_custom_call.1} parent=1 // pred_region
      %116 = dma.done [#allocation6], 256
    $region53: #{tpu_custom_call.1} parent=1 // pred_fallthru
      _
    // Predicated region
    $region54: #{tpu_custom_call.1} parent=1 // pred_check
      _
    $region55: #{tpu_custom_call.1} parent=1 // pred_check_branch
      %118 = sbr.rel (0) target = $region57
    $region56: #{tpu_custom_call.1} parent=1 // pred_region
      %119 = dma.done [#allocation6], 256
    $region57: #{tpu_custom_call.1} parent=1 // pred_fallthru
      _
    // Predicated region
    $region58: #{tpu_custom_call.1} parent=1 // pred_check
      _
    $region59: #{tpu_custom_call.1} parent=1 // pred_check_branch
      %121 = sbr.rel (0) target = $region61
    $region60: #{tpu_custom_call.1} parent=1 // pred_region
      %122 = dma.done [#allocation9], 512
    $region61: #{tpu_custom_call.1} parent=1 // pred_fallthru
      _
    // Predicated region
    $region62: #{tpu_custom_call.1} parent=1 // pred_check
      _
    $region63: #{tpu_custom_call.1} parent=1 // pred_check_branch
      %124 = sbr.rel (0) target = $region65
    $region64: #{tpu_custom_call.1} parent=1 // pred_region
      %125 = dma.done [#allocation9], 512
    $region65: #{tpu_custom_call.1} parent=1 // pred_fallthru
      _
    // Predicated region
    $region66: #{tpu_custom_call.1} parent=1 // pred_check
      _
    $region67: #{tpu_custom_call.1} parent=1 // pred_check_branch
      %127 = sbr.rel (0) target = $region69
    $region68: #{tpu_custom_call.1} parent=1 // pred_region
      %128 = dma.done [#allocation12], 512
    $region69: #{tpu_custom_call.1} parent=1 // pred_fallthru
      _
    // Predicated region
    $region70: #{tpu_custom_call.1} parent=1 // pred_check
      _
    $region71: #{tpu_custom_call.1} parent=1 // pred_check_branch
      %130 = sbr.rel (0) target = $region73
    $region72: #{tpu_custom_call.1} parent=1 // pred_region
      %131 = dma.done [#allocation12], 16
    $region73: #{tpu_custom_call.1} parent=1 // pred_fallthru
      _
    %v132 = vld [vmem:[#allocation2] sm:$0xff]
    %v133 = vld [vmem:[#allocation2 + $0x8] sm:$0xff]
    %v134 = vld [vmem:[#allocation8] sm:$0xff]
    %v135 = vld [vmem:[#allocation8 + $0x8] sm:$0xff]
    %v136 = vld [vmem:[#allocation8 + $0x10] sm:$0xff]
    %v137 = vld [vmem:[#allocation8 + $0x18] sm:$0xff]
    %v138 = vld [vmem:[%s6] sm:$0x1]
    %v140 = vlaneseq
    %v141 = vshrl.u32 %v140, 7
    %v142 = vsub.s32 0, %v141
    %v143 = vrot.slane %v138, %v142
    %vm145 = vcmask 261120
    %v147 = vsel %vm145, %v132, 0
    %v150 = vsel %vm145, %v133, 0
    %152 = vmatprep.subr.mxu0 0.0
    %153 = vmatpush1.msra.mxu0 %v134
    %154 = vmatprep.subr.mxu0 0.0
    %155 = vmatpush1.msra.mxu0 %v135
    %156 = vmatprep.subr.mxu0 0.0
    %157 = vmatpush1.msra.mxu0 %v136
    %158 = vmatprep.subr.mxu0 0.0
    %159 = vmatpush1.msra.mxu0 %v137
    %160 = vmatprep.subr.mxu0 0.0
    %161 = vmatpush1.msra.mxu0 0.0
    %162 = vmatprep.subr.mxu0 0.0
    %163 = vmatpush1.msra.mxu0 0.0
    %164 = vmatprep.subr.mxu0 0.0
    %165 = vmatpush1.msra.mxu0 0.0
    %166 = vmatprep.subr.mxu0 0.0
    %167 = vmatpush1.msra.mxu0 0.0
    %168 = vmatprep.subr.mxu0 0.0
    %169 = vmatpush1.msra.mxu0 0.0
    %170 = vmatprep.subr.mxu0 0.0
    %171 = vmatpush1.msra.mxu0 0.0
    %172 = vmatprep.subr.mxu0 0.0
    %173 = vmatpush1.msra.mxu0 0.0
    %174 = vmatprep.subr.mxu0 0.0
    %175 = vmatpush1.msra.mxu0 0.0
    %176 = vmatprep.subr.mxu0 0.0
    %177 = vmatpush1.msra.mxu0 0.0
    %178 = vmatprep.subr.mxu0 0.0
    %179 = vmatpush1.msra.mxu0 0.0
    %180 = vmatprep.subr.mxu0 0.0
    %181 = vmatpush1.msra.mxu0 0.0
    %182 = vmatprep.subr.mxu0 0.0
    %183 = vmatpush1.msra.mxu0 0.0
    %184 = vmatprep.subr.mxu0 0.0
    %185 = vmatpush1.msra.mxu0 0.0
    %186 = vmatprep.subr.mxu0 0.0
    %187 = vmatpush1.msra.mxu0 0.0
    %188 = vmatprep.subr.mxu0 0.0
    %189 = vmatpush1.msra.mxu0 0.0
    %190 = vmatprep.subr.mxu0 0.0
    %191 = vmatpush1.msra.mxu0 0.0
    %192 = vmatprep.subr.mxu0 0.0
    %193 = vmatpush1.msra.mxu0 0.0
    %194 = vmatprep.subr.mxu0 0.0
    %195 = vmatpush1.msra.mxu0 0.0
    %196 = vmatprep.subr.mxu0 0.0
    %197 = vmatpush1.msra.mxu0 0.0
    %198 = vmatprep.subr.mxu0 0.0
    %199 = vmatpush1.msra.mxu0 0.0
    %200 = vmatprep.subr.mxu0 0.0
    %201 = vmatpush1.msra.mxu0 0.0
    %202 = vmatprep.subr.mxu0 0.0
    %203 = vmatpush1.msra.mxu0 0.0
    %204 = vmatprep.subr.mxu0 0.0
    %205 = vmatpush1.msra.mxu0 0.0
    %206 = vmatprep.subr.mxu0 0.0
    %207 = vmatpush1.msra.mxu0 0.0
    %208 = vmatprep.subr.mxu0 0.0
    %209 = vmatpush1.msra.mxu0 0.0
    %210 = vmatprep.subr.mxu0 0.0
    %211 = vmatpush1.msra.mxu0 0.0
    %212 = vmatprep.subr.mxu0 0.0
    %213 = vmatpush1.msra.mxu0 0.0
    %214 = vmatprep.subr.mxu0 0.0
    %215 = vmatpush1.msra.mxu0 0.0
    %216 = vmatprep.mubr.f32.mxu0 0.0
    %217 = vmatmul.mubr.f32.gmra.mrb[0].mxu0 %v147
    %v218 = vpop.f32.mrb[0].mxu0
    %v219 = vadd.f32 %v143, %v218
    %v220 = vpop.f32.mrb[0].mxu0
    %221 = vmatprep.mubr.f32.mxu0 0.0
    %222 = vmatmul.mubr.f32.gmra.mrb[0].mxu0 %v150
    %v223 = vpop.f32.mrb[0].mxu0
    %v224 = vadd.f32 %v143, %v223
    %v225 = vpop.f32.mrb[0].mxu0
    %226 = vdwg.mxu0
    %v227 = vld [vmem:[#allocation5] sm:$0xff]
    %v228 = vld [vmem:[#allocation5 + $0x8] sm:$0xff]
    %v229 = vld [vmem:[#allocation10] sm:$0xff]
    %v230 = vld [vmem:[#allocation10 + $0x8] sm:$0xff]
    %v231 = vld [vmem:[#allocation10 + $0x10] sm:$0xff]
    %v232 = vld [vmem:[#allocation10 + $0x18] sm:$0xff]
    %v233 = vld [vmem:[%s7] sm:$0x1]
    %v235 = vlaneseq
    %v236 = vshrl.u32 %v235, 7
    %v237 = vsub.s32 0, %v236
    %v238 = vrot.slane %v233, %v237
    %v241 = vsel %vm145, %v227, 0
    %v244 = vsel %vm145, %v228, 0
    %246 = vmatprep.subr.mxu0 0.0
    %247 = vmatpush1.msra.mxu0 %v229
    %248 = vmatprep.subr.mxu0 0.0
    %249 = vmatpush1.msra.mxu0 %v230
    %250 = vmatprep.subr.mxu0 0.0
    %251 = vmatpush1.msra.mxu0 %v231
    %252 = vmatprep.subr.mxu0 0.0
    %253 = vmatpush1.msra.mxu0 %v232
    %254 = vmatprep.subr.mxu0 0.0
    %255 = vmatpush1.msra.mxu0 0.0
    %256 = vmatprep.subr.mxu0 0.0
    %257 = vmatpush1.msra.mxu0 0.0
    %258 = vmatprep.subr.mxu0 0.0
    %259 = vmatpush1.msra.mxu0 0.0
    %260 = vmatprep.subr.mxu0 0.0
    %261 = vmatpush1.msra.mxu0 0.0
    %262 = vmatprep.subr.mxu0 0.0
    %263 = vmatpush1.msra.mxu0 0.0
    %264 = vmatprep.subr.mxu0 0.0
    %265 = vmatpush1.msra.mxu0 0.0
    %266 = vmatprep.subr.mxu0 0.0
    %267 = vmatpush1.msra.mxu0 0.0
    %268 = vmatprep.subr.mxu0 0.0
    %269 = vmatpush1.msra.mxu0 0.0
    %270 = vmatprep.subr.mxu0 0.0
    %271 = vmatpush1.msra.mxu0 0.0
    %272 = vmatprep.subr.mxu0 0.0
    %273 = vmatpush1.msra.mxu0 0.0
    %274 = vmatprep.subr.mxu0 0.0
    %275 = vmatpush1.msra.mxu0 0.0
    %276 = vmatprep.subr.mxu0 0.0
    %277 = vmatpush1.msra.mxu0 0.0
    %278 = vmatprep.subr.mxu0 0.0
    %279 = vmatpush1.msra.mxu0 0.0
    %280 = vmatprep.subr.mxu0 0.0
    %281 = vmatpush1.msra.mxu0 0.0
    %282 = vmatprep.subr.mxu0 0.0
    %283 = vmatpush1.msra.mxu0 0.0
    %284 = vmatprep.subr.mxu0 0.0
    %285 = vmatpush1.msra.mxu0 0.0
    %286 = vmatprep.subr.mxu0 0.0
    %287 = vmatpush1.msra.mxu0 0.0
    %288 = vmatprep.subr.mxu0 0.0
    %289 = vmatpush1.msra.mxu0 0.0
    %290 = vmatprep.subr.mxu0 0.0
    %291 = vmatpush1.msra.mxu0 0.0
    %292 = vmatprep.subr.mxu0 0.0
    %293 = vmatpush1.msra.mxu0 0.0
    %294 = vmatprep.subr.mxu0 0.0
    %295 = vmatpush1.msra.mxu0 0.0
    %296 = vmatprep.subr.mxu0 0.0
    %297 = vmatpush1.msra.mxu0 0.0
    %298 = vmatprep.subr.mxu0 0.0
    %299 = vmatpush1.msra.mxu0 0.0
    %300 = vmatprep.subr.mxu0 0.0
    %301 = vmatpush1.msra.mxu0 0.0
    %302 = vmatprep.subr.mxu0 0.0
    %303 = vmatpush1.msra.mxu0 0.0
    %304 = vmatprep.subr.mxu0 0.0
    %305 = vmatpush1.msra.mxu0 0.0
    %306 = vmatprep.subr.mxu0 0.0
    %307 = vmatpush1.msra.mxu0 0.0
    %308 = vmatprep.subr.mxu0 0.0
    %309 = vmatpush1.msra.mxu0 0.0
    %310 = vmatprep.mubr.f32.mxu0 0.0
    %311 = vmatmul.mubr.f32.gmra.mrb[0].mxu0 %v241
    %v312 = vpop.f32.mrb[0].mxu0
    %v313 = vadd.f32 %v238, %v312
    %v314 = vpop.f32.mrb[0].mxu0
    %315 = vmatprep.mubr.f32.mxu0 0.0
    %316 = vmatmul.mubr.f32.gmra.mrb[0].mxu0 %v244
    %v317 = vpop.f32.mrb[0].mxu0
    %v318 = vadd.f32 %v238, %v317
    %v319 = vpop.f32.mrb[0].mxu0
    %320 = vdwg.mxu0
    %v321 = vld [vmem:[#allocation7] sm:$0xff]
    %v322 = vld [vmem:[#allocation7 + $0x8] sm:$0xff]
    %v323 = vld [vmem:[#allocation11] sm:$0xff]
    %v324 = vld [vmem:[#allocation11 + $0x8] sm:$0xff]
    %v325 = vld [vmem:[#allocation11 + $0x10] sm:$0xff]
    %v326 = vld [vmem:[#allocation11 + $0x18] sm:$0xff]
    %v327 = vld [vmem:[#allocation13] sm:$0x1]
    %v329 = vlaneseq
    %v330 = vshrl.u32 %v329, 7
    %v331 = vsub.s32 0, %v330
    %v332 = vrot.slane %v327, %v331
    %v335 = vsel %vm145, %v321, 0
    %v338 = vsel %vm145, %v322, 0
    %340 = vmatprep.subr.mxu0 0.0
    %341 = vmatpush1.msra.mxu0 %v323
    %342 = vmatprep.subr.mxu0 0.0
    %343 = vmatpush1.msra.mxu0 %v324
    %344 = vmatprep.subr.mxu0 0.0
    %345 = vmatpush1.msra.mxu0 %v325
    %346 = vmatprep.subr.mxu0 0.0
    %347 = vmatpush1.msra.mxu0 %v326
    %348 = vmatprep.subr.mxu0 0.0
    %349 = vmatpush1.msra.mxu0 0.0
    %350 = vmatprep.subr.mxu0 0.0
    %351 = vmatpush1.msra.mxu0 0.0
    %352 = vmatprep.subr.mxu0 0.0
    %353 = vmatpush1.msra.mxu0 0.0
    %354 = vmatprep.subr.mxu0 0.0
    %355 = vmatpush1.msra.mxu0 0.0
    %356 = vmatprep.subr.mxu0 0.0
    %357 = vmatpush1.msra.mxu0 0.0
    %358 = vmatprep.subr.mxu0 0.0
    %359 = vmatpush1.msra.mxu0 0.0
    %360 = vmatprep.subr.mxu0 0.0
    %361 = vmatpush1.msra.mxu0 0.0
    %362 = vmatprep.subr.mxu0 0.0
    %363 = vmatpush1.msra.mxu0 0.0
    %364 = vmatprep.subr.mxu0 0.0
    %365 = vmatpush1.msra.mxu0 0.0
    %366 = vmatprep.subr.mxu0 0.0
    %367 = vmatpush1.msra.mxu0 0.0
    %368 = vmatprep.subr.mxu0 0.0
    %369 = vmatpush1.msra.mxu0 0.0
    %370 = vmatprep.subr.mxu0 0.0
    %371 = vmatpush1.msra.mxu0 0.0
    %372 = vmatprep.subr.mxu0 0.0
    %373 = vmatpush1.msra.mxu0 0.0
    %374 = vmatprep.subr.mxu0 0.0
    %375 = vmatpush1.msra.mxu0 0.0
    %376 = vmatprep.subr.mxu0 0.0
    %377 = vmatpush1.msra.mxu0 0.0
    %378 = vmatprep.subr.mxu0 0.0
    %379 = vmatpush1.msra.mxu0 0.0
    %380 = vmatprep.subr.mxu0 0.0
    %381 = vmatpush1.msra.mxu0 0.0
    %382 = vmatprep.subr.mxu0 0.0
    %383 = vmatpush1.msra.mxu0 0.0
    %384 = vmatprep.subr.mxu0 0.0
    %385 = vmatpush1.msra.mxu0 0.0
    %386 = vmatprep.subr.mxu0 0.0
    %387 = vmatpush1.msra.mxu0 0.0
    %388 = vmatprep.subr.mxu0 0.0
    %389 = vmatpush1.msra.mxu0 0.0
    %390 = vmatprep.subr.mxu0 0.0
    %391 = vmatpush1.msra.mxu0 0.0
    %392 = vmatprep.subr.mxu0 0.0
    %393 = vmatpush1.msra.mxu0 0.0
    %394 = vmatprep.subr.mxu0 0.0
    %395 = vmatpush1.msra.mxu0 0.0
    %396 = vmatprep.subr.mxu0 0.0
    %397 = vmatpush1.msra.mxu0 0.0
    %398 = vmatprep.subr.mxu0 0.0
    %399 = vmatpush1.msra.mxu0 0.0
    %400 = vmatprep.subr.mxu0 0.0
    %401 = vmatpush1.msra.mxu0 0.0
    %402 = vmatprep.subr.mxu0 0.0
    %403 = vmatpush1.msra.mxu0 0.0
    %404 = vmatprep.mubr.f32.mxu0 0.0
    %405 = vmatmul.mubr.f32.gmra.mrb[0].mxu0 %v335
    %v406 = vpop.f32.mrb[0].mxu0
    %v407 = vadd.f32 %v332, %v406
    %v408 = vpop.f32.mrb[0].mxu0
    %409 = vmatprep.mubr.f32.mxu0 0.0
    %410 = vmatmul.mubr.f32.gmra.mrb[0].mxu0 %v338
    %v411 = vpop.f32.mrb[0].mxu0
    %v412 = vadd.f32 %v332, %v411
    %v413 = vpop.f32.mrb[0].mxu0
    %414 = vdwg.mxu0
    %v415 = vlaneseq
    %v416 = vshrl.u32 %v415, 7
    %v417 = vadd.s32 %v416, 8
    %vm418 = vcmp.lt.s32.totalorder %v416, 0
    %v419 = vsub.s32 0, %v416
    %v420 = vsel %vm418, %v419, %v416
    %v421 = vshrl.u32 %v420, 1
    %v422 = vand.u32 %v420, 1
    %v423 = vsub.s32 0, %v422
    %v424 = vsel %vm418, %v423, %v422
    %vm425 = vcmp.lt.s32.totalorder %v417, 0
    %v426 = vsub.s32 0, %v417
    %v427 = vsel %vm425, %v426, %v417
    %v428 = vshrl.u32 %v427, 1
    %v429 = vand.u32 %v427, 1
    %v430 = vsub.s32 0, %v429
    %v431 = vsel %vm425, %v430, %v429
    %vm432 = vcmp.ne.s32.totalorder %v424, 0
    %vm433 = vcmp.ne.s32.totalorder %v431, 0
    %vm434 = vcmp.lt.s32.totalorder %v424, 0
    %vm435 = vcmp.lt.s32.totalorder %v431, 0
    %vm436 = vmand %vm434, %vm432
    %vm437 = vmand %vm435, %vm433
    %v438 = vadd.s32 %v424, 2
    %v439 = vadd.s32 %v431, 2
    %v440 = vsel %vm436, %v438, %v424
    %v441 = vsel %vm437, %v439, %v431
    %v442 = vlaneseq
    %v443 = vand.u32 %v442, 127
    %vm444 = vcmp.lt.s32.totalorder %v443, 0
    %v445 = vsub.s32 0, %v443
    %v446 = vsel %vm444, %v445, %v443
    %v447 = vshrl.u32 %v446, 1
    %v448 = vand.u32 %v446, 1
    %v449 = vsub.s32 0, %v448
    %v450 = vsel %vm444, %v449, %v448
    %vm451 = vcmp.ne.s32.totalorder %v450, 0
    %vm452 = vcmp.lt.s32.totalorder %v450, 0
    %vm453 = vmand %vm452, %vm451
    %v454 = vadd.s32 %v450, 2
    %v455 = vsel %vm453, %v454, %v450
    %vm456 = vcmp.eq.s32.totalorder %v440, %v455
    %vm457 = vcmp.eq.s32.totalorder %v441, %v455
    %v458 = vsel %vm456, 0.0, -1e+30
    %v459 = vsel %vm457, 0.0, -1e+30
    %vm460 = vcmask 64512
    %v462 = vsel %vm460, %v219, 0
    %v465 = vsel %vm460, %v224, 0
    %v468 = vsel %vm460, %v313, 0
    %v471 = vsel %vm460, %v318, 0
    %473 = vmatprep.subr.mxu0 0.0
    %474 = vmatpush1.xpose.msra.mxu0 %v468
    %475 = vmatprep.subr.mxu0 0.0
    %476 = vmatpush1.xpose.msra.mxu0 %v471
    %477 = vmatprep.subr.mxu0 0.0
    %478 = vmatpush1.xpose.msra.mxu0 0.0
    %479 = vmatprep.subr.mxu0 0.0
    %480 = vmatpush1.xpose.msra.mxu0 0.0
    %481 = vmatprep.subr.mxu0 0.0
    %482 = vmatpush1.xpose.msra.mxu0 0.0
    %483 = vmatprep.subr.mxu0 0.0
    %484 = vmatpush1.xpose.msra.mxu0 0.0
    %485 = vmatprep.subr.mxu0 0.0
    %486 = vmatpush1.xpose.msra.mxu0 0.0
    %487 = vmatprep.subr.mxu0 0.0
    %488 = vmatpush1.xpose.msra.mxu0 0.0
    %489 = vmatprep.subr.mxu0 0.0
    %490 = vmatpush1.xpose.msra.mxu0 0.0
    %491 = vmatprep.subr.mxu0 0.0
    %492 = vmatpush1.xpose.msra.mxu0 0.0
    %493 = vmatprep.subr.mxu0 0.0
    %494 = vmatpush1.xpose.msra.mxu0 0.0
    %495 = vmatprep.subr.mxu0 0.0
    %496 = vmatpush1.xpose.msra.mxu0 0.0
    %497 = vmatprep.subr.mxu0 0.0
    %498 = vmatpush1.xpose.msra.mxu0 0.0
    %499 = vmatprep.subr.mxu0 0.0
    %500 = vmatpush1.xpose.msra.mxu0 0.0
    %501 = vmatprep.subr.mxu0 0.0
    %502 = vmatpush1.xpose.msra.mxu0 0.0
    %503 = vmatprep.subr.mxu0 0.0
    %504 = vmatpush1.xpose.msra.mxu0 0.0
    %505 = vmatprep.subr.mxu0 0.0
    %506 = vmatpush1.xpose.msra.mxu0 0.0
    %507 = vmatprep.subr.mxu0 0.0
    %508 = vmatpush1.xpose.msra.mxu0 0.0
    %509 = vmatprep.subr.mxu0 0.0
    %510 = vmatpush1.xpose.msra.mxu0 0.0
    %511 = vmatprep.subr.mxu0 0.0
    %512 = vmatpush1.xpose.msra.mxu0 0.0
    %513 = vmatprep.subr.mxu0 0.0
    %514 = vmatpush1.xpose.msra.mxu0 0.0
    %515 = vmatprep.subr.mxu0 0.0
    %516 = vmatpush1.xpose.msra.mxu0 0.0
    %517 = vmatprep.subr.mxu0 0.0
    %518 = vmatpush1.xpose.msra.mxu0 0.0
    %519 = vmatprep.subr.mxu0 0.0
    %520 = vmatpush1.xpose.msra.mxu0 0.0
    %521 = vmatprep.subr.mxu0 0.0
    %522 = vmatpush1.xpose.msra.mxu0 0.0
    %523 = vmatprep.subr.mxu0 0.0
    %524 = vmatpush1.xpose.msra.mxu0 0.0
    %525 = vmatprep.subr.mxu0 0.0
    %526 = vmatpush1.xpose.msra.mxu0 0.0
    %527 = vmatprep.subr.mxu0 0.0
    %528 = vmatpush1.xpose.msra.mxu0 0.0
    %529 = vmatprep.subr.mxu0 0.0
    %530 = vmatpush1.xpose.msra.mxu0 0.0
    %531 = vmatprep.subr.mxu0 0.0
    %532 = vmatpush1.xpose.msra.mxu0 0.0
    %533 = vmatprep.subr.mxu0 0.0
    %534 = vmatpush1.xpose.msra.mxu0 0.0
    %535 = vmatprep.subr.mxu0 0.0
    %536 = vmatpush1.xpose.msra.mxu0 0.0
    %537 = vmatprep.mubr.f32.mxu0 0.0
    %538 = vmatmul.mubr.f32.gmra.mrb[0].mxu0 %v462
    %v539 = vpop.f32.mrb[0].mxu0
    %v540 = vadd.f32 0.0, %v539
    %v541 = vpop.f32.mrb[0].mxu0
    %542 = vmatprep.mubr.f32.mxu0 0.0
    %543 = vmatmul.mubr.f32.gmra.mrb[0].mxu0 %v465
    %v544 = vpop.f32.mrb[0].mxu0
    %v545 = vadd.f32 0.0, %v544
    %v546 = vpop.f32.mrb[0].mxu0
    %547 = vdwg.mxu0
    %v548 = vmul.f32 %v540, 0.35355338
    %v549 = vmul.f32 %v545, 0.35355338
    %v550 = vadd.f32 %v548, %v458
    %v551 = vadd.f32 %v549, %v459
    %vm552 = vcmask 130048
    %v553 = vsel %vm552, %v550, -inf
    %554 = vmax.xlane.f32.xlu0 %v553
    %v555 = vpop.xlane.xlu0 %554
    %v556 = vsel %vm552, %v551, -inf
    %557 = vmax.xlane.f32.xlu0 %v556
    %v558 = vpop.xlane.xlu0 %557
    %v559 = vsub.f32 %v550, %v555
    %v560 = vsub.f32 %v551, %v558
    %v561 = vmul.f32 %v559, 1.442695
    %v562 = vpow.pop %v561
    %v563 = vmul.f32 %v560, 1.442695
    %v564 = vpow.pop %v563
    %v565 = vsel %vm552, %v562, 0.0
    %566 = vadd.xlane.f32.xlu0 %v565
    %v567 = vpop.xlane.xlu0 %566
    %v568 = vsel %vm552, %v564, 0.0
    %569 = vadd.xlane.f32.xlu0 %v568
    %v570 = vpop.xlane.xlu0 %569
    %v571 = vrcp.pop %v567
    %v572 = vmul.f32 %v562, %v571
    %v573 = vrcp.pop %v570
    %v574 = vmul.f32 %v564, %v573
    %v576 = vsel %vm552, %v572, 0
    %v579 = vsel %vm552, %v574, 0
    %581 = vmatprep.subr.mxu0 0.0
    %582 = vmatpush1.msra.mxu0 %v407
    %583 = vmatprep.subr.mxu0 0.0
    %584 = vmatpush1.msra.mxu0 %v412
    %585 = vmatprep.subr.mxu0 0.0
    %586 = vmatpush1.msra.mxu0 0.0
    %587 = vmatprep.subr.mxu0 0.0
    %588 = vmatpush1.msra.mxu0 0.0
    %589 = vmatprep.subr.mxu0 0.0
    %590 = vmatpush1.msra.mxu0 0.0
    %591 = vmatprep.subr.mxu0 0.0
    %592 = vmatpush1.msra.mxu0 0.0
    %593 = vmatprep.subr.mxu0 0.0
    %594 = vmatpush1.msra.mxu0 0.0
    %595 = vmatprep.subr.mxu0 0.0
    %596 = vmatpush1.msra.mxu0 0.0
    %597 = vmatprep.subr.mxu0 0.0
    %598 = vmatpush1.msra.mxu0 0.0
    %599 = vmatprep.subr.mxu0 0.0
    %600 = vmatpush1.msra.mxu0 0.0
    %601 = vmatprep.subr.mxu0 0.0
    %602 = vmatpush1.msra.mxu0 0.0
    %603 = vmatprep.subr.mxu0 0.0
    %604 = vmatpush1.msra.mxu0 0.0
    %605 = vmatprep.subr.mxu0 0.0
    %606 = vmatpush1.msra.mxu0 0.0
    %607 = vmatprep.subr.mxu0 0.0
    %608 = vmatpush1.msra.mxu0 0.0
    %609 = vmatprep.subr.mxu0 0.0
    %610 = vmatpush1.msra.mxu0 0.0
    %611 = vmatprep.subr.mxu0 0.0
    %612 = vmatpush1.msra.mxu0 0.0
    %613 = vmatprep.subr.mxu0 0.0
    %614 = vmatpush1.msra.mxu0 0.0
    %615 = vmatprep.subr.mxu0 0.0
    %616 = vmatpush1.msra.mxu0 0.0
    %617 = vmatprep.subr.mxu0 0.0
    %618 = vmatpush1.msra.mxu0 0.0
    %619 = vmatprep.subr.mxu0 0.0
    %620 = vmatpush1.msra.mxu0 0.0
    %621 = vmatprep.subr.mxu0 0.0
    %622 = vmatpush1.msra.mxu0 0.0
    %623 = vmatprep.subr.mxu0 0.0
    %624 = vmatpush1.msra.mxu0 0.0
    %625 = vmatprep.subr.mxu0 0.0
    %626 = vmatpush1.msra.mxu0 0.0
    %627 = vmatprep.subr.mxu0 0.0
    %628 = vmatpush1.msra.mxu0 0.0
    %629 = vmatprep.subr.mxu0 0.0
    %630 = vmatpush1.msra.mxu0 0.0
    %631 = vmatprep.subr.mxu0 0.0
    %632 = vmatpush1.msra.mxu0 0.0
    %633 = vmatprep.subr.mxu0 0.0
    %634 = vmatpush1.msra.mxu0 0.0
    %635 = vmatprep.subr.mxu0 0.0
    %636 = vmatpush1.msra.mxu0 0.0
    %637 = vmatprep.subr.mxu0 0.0
    %638 = vmatpush1.msra.mxu0 0.0
    %639 = vmatprep.subr.mxu0 0.0
    %640 = vmatpush1.msra.mxu0 0.0
    %641 = vmatprep.subr.mxu0 0.0
    %642 = vmatpush1.msra.mxu0 0.0
    %643 = vmatprep.subr.mxu0 0.0
    %644 = vmatpush1.msra.mxu0 0.0
    %645 = vmatprep.mubr.f32.mxu0 0.0
    %646 = vmatmul.mubr.f32.gmra.mrb[0].mxu0 %v576
    %v647 = vpop.f32.mrb[0].mxu0
    %v648 = vadd.f32 0.0, %v647
    %v649 = vpop.f32.mrb[0].mxu0
    %650 = vmatprep.mubr.f32.mxu0 0.0
    %651 = vmatmul.mubr.f32.gmra.mrb[0].mxu0 %v579
    %v652 = vpop.f32.mrb[0].mxu0
    %v653 = vadd.f32 0.0, %v652
    %v654 = vpop.f32.mrb[0].mxu0
    %655 = vdwg.mxu0
    %656 = vrot.lane.b32.xlu0 %v219, 120
    %v657 = vpop.permute.xlu0 %656
    %658 = vrot.lane.b32.xlu0 %v224, 120
    %v659 = vpop.permute.xlu0 %658
    %660 = vrot.lane.b32.xlu0 %v313, 120
    %v661 = vpop.permute.xlu0 %660
    %662 = vrot.lane.b32.xlu0 %v318, 120
    %v663 = vpop.permute.xlu0 %662
    %v664 = vsel %vm460, %v657, 0
    %v666 = vsel %vm460, %v659, 0
    %v668 = vsel %vm460, %v661, 0
    %v670 = vsel %vm460, %v663, 0
    %672 = vmatprep.subr.mxu0 0.0
    %673 = vmatpush1.xpose.msra.mxu0 %v668
    %674 = vmatprep.subr.mxu0 0.0
    %675 = vmatpush1.xpose.msra.mxu0 %v670
    %676 = vmatprep.subr.mxu0 0.0
    %677 = vmatpush1.xpose.msra.mxu0 0.0
    %678 = vmatprep.subr.mxu0 0.0
    %679 = vmatpush1.xpose.msra.mxu0 0.0
    %680 = vmatprep.subr.mxu0 0.0
    %681 = vmatpush1.xpose.msra.mxu0 0.0
    %682 = vmatprep.subr.mxu0 0.0
    %683 = vmatpush1.xpose.msra.mxu0 0.0
    %684 = vmatprep.subr.mxu0 0.0
    %685 = vmatpush1.xpose.msra.mxu0 0.0
    %686 = vmatprep.subr.mxu0 0.0
    %687 = vmatpush1.xpose.msra.mxu0 0.0
    %688 = vmatprep.subr.mxu0 0.0
    %689 = vmatpush1.xpose.msra.mxu0 0.0
    %690 = vmatprep.subr.mxu0 0.0
    %691 = vmatpush1.xpose.msra.mxu0 0.0
    %692 = vmatprep.subr.mxu0 0.0
    %693 = vmatpush1.xpose.msra.mxu0 0.0
    %694 = vmatprep.subr.mxu0 0.0
    %695 = vmatpush1.xpose.msra.mxu0 0.0
    %696 = vmatprep.subr.mxu0 0.0
    %697 = vmatpush1.xpose.msra.mxu0 0.0
    %698 = vmatprep.subr.mxu0 0.0
    %699 = vmatpush1.xpose.msra.mxu0 0.0
    %700 = vmatprep.subr.mxu0 0.0
    %701 = vmatpush1.xpose.msra.mxu0 0.0
    %702 = vmatprep.subr.mxu0 0.0
    %703 = vmatpush1.xpose.msra.mxu0 0.0
    %704 = vmatprep.subr.mxu0 0.0
    %705 = vmatpush1.xpose.msra.mxu0 0.0
    %706 = vmatprep.subr.mxu0 0.0
    %707 = vmatpush1.xpose.msra.mxu0 0.0
    %708 = vmatprep.subr.mxu0 0.0
    %709 = vmatpush1.xpose.msra.mxu0 0.0
    %710 = vmatprep.subr.mxu0 0.0
    %711 = vmatpush1.xpose.msra.mxu0 0.0
    %712 = vmatprep.subr.mxu0 0.0
    %713 = vmatpush1.xpose.msra.mxu0 0.0
    %714 = vmatprep.subr.mxu0 0.0
    %715 = vmatpush1.xpose.msra.mxu0 0.0
    %716 = vmatprep.subr.mxu0 0.0
    %717 = vmatpush1.xpose.msra.mxu0 0.0
    %718 = vmatprep.subr.mxu0 0.0
    %719 = vmatpush1.xpose.msra.mxu0 0.0
    %720 = vmatprep.subr.mxu0 0.0
    %721 = vmatpush1.xpose.msra.mxu0 0.0
    %722 = vmatprep.subr.mxu0 0.0
    %723 = vmatpush1.xpose.msra.mxu0 0.0
    %724 = vmatprep.subr.mxu0 0.0
    %725 = vmatpush1.xpose.msra.mxu0 0.0
    %726 = vmatprep.subr.mxu0 0.0
    %727 = vmatpush1.xpose.msra.mxu0 0.0
    %728 = vmatprep.subr.mxu0 0.0
    %729 = vmatpush1.xpose.msra.mxu0 0.0
    %730 = vmatprep.subr.mxu0 0.0
    %731 = vmatpush1.xpose.msra.mxu0 0.0
    %732 = vmatprep.subr.mxu0 0.0
    %733 = vmatpush1.xpose.msra.mxu0 0.0
    %734 = vmatprep.subr.mxu0 0.0
    %735 = vmatpush1.xpose.msra.mxu0 0.0
    %736 = vmatprep.mubr.f32.mxu0 0.0
    %737 = vmatmul.mubr.f32.gmra.mrb[0].mxu0 %v664
    %v738 = vpop.f32.mrb[0].mxu0
    %v739 = vadd.f32 0.0, %v738
    %v740 = vpop.f32.mrb[0].mxu0
    %741 = vmatprep.mubr.f32.mxu0 0.0
    %742 = vmatmul.mubr.f32.gmra.mrb[0].mxu0 %v666
    %v743 = vpop.f32.mrb[0].mxu0
    %v744 = vadd.f32 0.0, %v743
    %v745 = vpop.f32.mrb[0].mxu0
    %746 = vdwg.mxu0
    %v747 = vmul.f32 %v739, 0.35355338
    %v748 = vmul.f32 %v744, 0.35355338
    %v749 = vadd.f32 %v747, %v458
    %v750 = vadd.f32 %v748, %v459
    %v751 = vsel %vm552, %v749, -inf
    %752 = vmax.xlane.f32.xlu0 %v751
    %v753 = vpop.xlane.xlu0 %752
    %v754 = vsel %vm552, %v750, -inf
    %755 = vmax.xlane.f32.xlu0 %v754
    %v756 = vpop.xlane.xlu0 %755
    %v757 = vsub.f32 %v749, %v753
    %v758 = vsub.f32 %v750, %v756
    %v759 = vmul.f32 %v757, 1.442695
    %v760 = vpow.pop %v759
    %v761 = vmul.f32 %v758, 1.442695
    %v762 = vpow.pop %v761
    %v763 = vsel %vm552, %v760, 0.0
    %764 = vadd.xlane.f32.xlu0 %v763
    %v765 = vpop.xlane.xlu0 %764
    %v766 = vsel %vm552, %v762, 0.0
    %767 = vadd.xlane.f32.xlu0 %v766
    %v768 = vpop.xlane.xlu0 %767
    %v769 = vrcp.pop %v765
    %v770 = vmul.f32 %v760, %v769
    %v771 = vrcp.pop %v768
    %v772 = vmul.f32 %v762, %v771
    %775 = vrot.lane.b32.xlu0 %v407, 120
    %v776 = vpop.permute.xlu0 %775
    %777 = vrot.lane.b32.xlu0 %v412, 120
    %v778 = vpop.permute.xlu0 %777
    %v782 = vsel %vm552, %v770, 0
    %v785 = vsel %vm552, %v772, 0
    %787 = vmatprep.subr.mxu0 0.0
    %788 = vmatpush1.msra.mxu0 %v776
    %789 = vmatprep.subr.mxu0 0.0
    %790 = vmatpush1.msra.mxu0 %v778
    %791 = vmatprep.subr.mxu0 0.0
    %792 = vmatpush1.msra.mxu0 0.0
    %793 = vmatprep.subr.mxu0 0.0
    %794 = vmatpush1.msra.mxu0 0.0
    %795 = vmatprep.subr.mxu0 0.0
    %796 = vmatpush1.msra.mxu0 0.0
    %797 = vmatprep.subr.mxu0 0.0
    %798 = vmatpush1.msra.mxu0 0.0
    %799 = vmatprep.subr.mxu0 0.0
    %800 = vmatpush1.msra.mxu0 0.0
    %801 = vmatprep.subr.mxu0 0.0
    %802 = vmatpush1.msra.mxu0 0.0
    %803 = vmatprep.subr.mxu0 0.0
    %804 = vmatpush1.msra.mxu0 0.0
    %805 = vmatprep.subr.mxu0 0.0
    %806 = vmatpush1.msra.mxu0 0.0
    %807 = vmatprep.subr.mxu0 0.0
    %808 = vmatpush1.msra.mxu0 0.0
    %809 = vmatprep.subr.mxu0 0.0
    %810 = vmatpush1.msra.mxu0 0.0
    %811 = vmatprep.subr.mxu0 0.0
    %812 = vmatpush1.msra.mxu0 0.0
    %813 = vmatprep.subr.mxu0 0.0
    %814 = vmatpush1.msra.mxu0 0.0
    %815 = vmatprep.subr.mxu0 0.0
    %816 = vmatpush1.msra.mxu0 0.0
    %817 = vmatprep.subr.mxu0 0.0
    %818 = vmatpush1.msra.mxu0 0.0
    %819 = vmatprep.subr.mxu0 0.0
    %820 = vmatpush1.msra.mxu0 0.0
    %821 = vmatprep.subr.mxu0 0.0
    %822 = vmatpush1.msra.mxu0 0.0
    %823 = vmatprep.subr.mxu0 0.0
    %824 = vmatpush1.msra.mxu0 0.0
    %825 = vmatprep.subr.mxu0 0.0
    %826 = vmatpush1.msra.mxu0 0.0
    %827 = vmatprep.subr.mxu0 0.0
    %828 = vmatpush1.msra.mxu0 0.0
    %829 = vmatprep.subr.mxu0 0.0
    %830 = vmatpush1.msra.mxu0 0.0
    %831 = vmatprep.subr.mxu0 0.0
    %832 = vmatpush1.msra.mxu0 0.0
    %833 = vmatprep.subr.mxu0 0.0
    %834 = vmatpush1.msra.mxu0 0.0
    %835 = vmatprep.subr.mxu0 0.0
    %836 = vmatpush1.msra.mxu0 0.0
    %837 = vmatprep.subr.mxu0 0.0
    %838 = vmatpush1.msra.mxu0 0.0
    %839 = vmatprep.subr.mxu0 0.0
    %840 = vmatpush1.msra.mxu0 0.0
    %841 = vmatprep.subr.mxu0 0.0
    %842 = vmatpush1.msra.mxu0 0.0
    %843 = vmatprep.subr.mxu0 0.0
    %844 = vmatpush1.msra.mxu0 0.0
    %845 = vmatprep.subr.mxu0 0.0
    %846 = vmatpush1.msra.mxu0 0.0
    %847 = vmatprep.subr.mxu0 0.0
    %848 = vmatpush1.msra.mxu0 0.0
    %849 = vmatprep.subr.mxu0 0.0
    %850 = vmatpush1.msra.mxu0 0.0
    %851 = vmatprep.mubr.f32.mxu0 0.0
    %852 = vmatmul.mubr.f32.gmra.mrb[0].mxu0 %v782
    %v853 = vpop.f32.mrb[0].mxu0
    %v854 = vadd.f32 0.0, %v853
    %v855 = vpop.f32.mrb[0].mxu0
    %856 = vmatprep.mubr.f32.mxu0 0.0
    %857 = vmatmul.mubr.f32.gmra.mrb[0].mxu0 %v785
    %v858 = vpop.f32.mrb[0].mxu0
    %v859 = vadd.f32 0.0, %v858
    %v860 = vpop.f32.mrb[0].mxu0
    %861 = vdwg.mxu0
    %862 = vrot.lane.b32.xlu0 %v219, 112
    %v863 = vpop.permute.xlu0 %862
    %864 = vrot.lane.b32.xlu0 %v224, 112
    %v865 = vpop.permute.xlu0 %864
    %866 = vrot.lane.b32.xlu0 %v313, 112
    %v867 = vpop.permute.xlu0 %866
    %868 = vrot.lane.b32.xlu0 %v318, 112
    %v869 = vpop.permute.xlu0 %868
    %v870 = vsel %vm460, %v863, 0
    %v872 = vsel %vm460, %v865, 0
    %v874 = vsel %vm460, %v867, 0
    %v876 = vsel %vm460, %v869, 0
    %878 = vmatprep.subr.mxu0 0.0
    %879 = vmatpush1.xpose.msra.mxu0 %v874
    %880 = vmatprep.subr.mxu0 0.0
    %881 = vmatpush1.xpose.msra.mxu0 %v876
    %882 = vmatprep.subr.mxu0 0.0
    %883 = vmatpush1.xpose.msra.mxu0 0.0
    %884 = vmatprep.subr.mxu0 0.0
    %885 = vmatpush1.xpose.msra.mxu0 0.0
    %886 = vmatprep.subr.mxu0 0.0
    %887 = vmatpush1.xpose.msra.mxu0 0.0
    %888 = vmatprep.subr.mxu0 0.0
    %889 = vmatpush1.xpose.msra.mxu0 0.0
    %890 = vmatprep.subr.mxu0 0.0
    %891 = vmatpush1.xpose.msra.mxu0 0.0
    %892 = vmatprep.subr.mxu0 0.0
    %893 = vmatpush1.xpose.msra.mxu0 0.0
    %894 = vmatprep.subr.mxu0 0.0
    %895 = vmatpush1.xpose.msra.mxu0 0.0
    %896 = vmatprep.subr.mxu0 0.0
    %897 = vmatpush1.xpose.msra.mxu0 0.0
    %898 = vmatprep.subr.mxu0 0.0
    %899 = vmatpush1.xpose.msra.mxu0 0.0
    %900 = vmatprep.subr.mxu0 0.0
    %901 = vmatpush1.xpose.msra.mxu0 0.0
    %902 = vmatprep.subr.mxu0 0.0
    %903 = vmatpush1.xpose.msra.mxu0 0.0
    %904 = vmatprep.subr.mxu0 0.0
    %905 = vmatpush1.xpose.msra.mxu0 0.0
    %906 = vmatprep.subr.mxu0 0.0
    %907 = vmatpush1.xpose.msra.mxu0 0.0
    %908 = vmatprep.subr.mxu0 0.0
    %909 = vmatpush1.xpose.msra.mxu0 0.0
    %910 = vmatprep.subr.mxu0 0.0
    %911 = vmatpush1.xpose.msra.mxu0 0.0
    %912 = vmatprep.subr.mxu0 0.0
    %913 = vmatpush1.xpose.msra.mxu0 0.0
    %914 = vmatprep.subr.mxu0 0.0
    %915 = vmatpush1.xpose.msra.mxu0 0.0
    %916 = vmatprep.subr.mxu0 0.0
    %917 = vmatpush1.xpose.msra.mxu0 0.0
    %918 = vmatprep.subr.mxu0 0.0
    %919 = vmatpush1.xpose.msra.mxu0 0.0
    %920 = vmatprep.subr.mxu0 0.0
    %921 = vmatpush1.xpose.msra.mxu0 0.0
    %922 = vmatprep.subr.mxu0 0.0
    %923 = vmatpush1.xpose.msra.mxu0 0.0
    %924 = vmatprep.subr.mxu0 0.0
    %925 = vmatpush1.xpose.msra.mxu0 0.0
    %926 = vmatprep.subr.mxu0 0.0
    %927 = vmatpush1.xpose.msra.mxu0 0.0
    %928 = vmatprep.subr.mxu0 0.0
    %929 = vmatpush1.xpose.msra.mxu0 0.0
    %930 = vmatprep.subr.mxu0 0.0
    %931 = vmatpush1.xpose.msra.mxu0 0.0
    %932 = vmatprep.subr.mxu0 0.0
    %933 = vmatpush1.xpose.msra.mxu0 0.0
    %934 = vmatprep.subr.mxu0 0.0
    %935 = vmatpush1.xpose.msra.mxu0 0.0
    %936 = vmatprep.subr.mxu0 0.0
    %937 = vmatpush1.xpose.msra.mxu0 0.0
    %938 = vmatprep.subr.mxu0 0.0
    %939 = vmatpush1.xpose.msra.mxu0 0.0
    %940 = vmatprep.subr.mxu0 0.0
    %941 = vmatpush1.xpose.msra.mxu0 0.0
    %942 = vmatprep.mubr.f32.mxu0 0.0
    %943 = vmatmul.mubr.f32.gmra.mrb[0].mxu0 %v870
    %v944 = vpop.f32.mrb[0].mxu0
    %v945 = vadd.f32 0.0, %v944
    %v946 = vpop.f32.mrb[0].mxu0
    %947 = vmatprep.mubr.f32.mxu0 0.0
    %948 = vmatmul.mubr.f32.gmra.mrb[0].mxu0 %v872
    %v949 = vpop.f32.mrb[0].mxu0
    %v950 = vadd.f32 0.0, %v949
    %v951 = vpop.f32.mrb[0].mxu0
    %952 = vdwg.mxu0
    %v953 = vmul.f32 %v945, 0.35355338
    %v954 = vmul.f32 %v950, 0.35355338
    %v955 = vadd.f32 %v953, %v458
    %v956 = vadd.f32 %v954, %v459
    %v957 = vsel %vm552, %v955, -inf
    %958 = vmax.xlane.f32.xlu0 %v957
    %v959 = vpop.xlane.xlu0 %958
    %v960 = vsel %vm552, %v956, -inf
    %961 = vmax.xlane.f32.xlu0 %v960
    %v962 = vpop.xlane.xlu0 %961
    %v963 = vsub.f32 %v955, %v959
    %v964 = vsub.f32 %v956, %v962
    %v965 = vmul.f32 %v963, 1.442695
    %v966 = vpow.pop %v965
    %v967 = vmul.f32 %v964, 1.442695
    %v968 = vpow.pop %v967
    %v969 = vsel %vm552, %v966, 0.0
    %970 = vadd.xlane.f32.xlu0 %v969
    %v971 = vpop.xlane.xlu0 %970
    %v972 = vsel %vm552, %v968, 0.0
    %973 = vadd.xlane.f32.xlu0 %v972
    %v974 = vpop.xlane.xlu0 %973
    %v975 = vrcp.pop %v971
    %v976 = vmul.f32 %v966, %v975
    %v977 = vrcp.pop %v974
    %v978 = vmul.f32 %v968, %v977
    %979 = vrot.lane.b32.xlu0 %v407, 112
    %v980 = vpop.permute.xlu0 %979
    %981 = vrot.lane.b32.xlu0 %v412, 112
    %v982 = vpop.permute.xlu0 %981
    %v986 = vsel %vm552, %v976, 0
    %v989 = vsel %vm552, %v978, 0
    %991 = vmatprep.subr.mxu0 0.0
    %992 = vmatpush1.msra.mxu0 %v980
    %993 = vmatprep.subr.mxu0 0.0
    %994 = vmatpush1.msra.mxu0 %v982
    %995 = vmatprep.subr.mxu0 0.0
    %996 = vmatpush1.msra.mxu0 0.0
    %997 = vmatprep.subr.mxu0 0.0
    %998 = vmatpush1.msra.mxu0 0.0
    %999 = vmatprep.subr.mxu0 0.0
    %1000 = vmatpush1.msra.mxu0 0.0
    %1001 = vmatprep.subr.mxu0 0.0
    %1002 = vmatpush1.msra.mxu0 0.0
    %1003 = vmatprep.subr.mxu0 0.0
    %1004 = vmatpush1.msra.mxu0 0.0
    %1005 = vmatprep.subr.mxu0 0.0
    %1006 = vmatpush1.msra.mxu0 0.0
    %1007 = vmatprep.subr.mxu0 0.0
    %1008 = vmatpush1.msra.mxu0 0.0
    %1009 = vmatprep.subr.mxu0 0.0
    %1010 = vmatpush1.msra.mxu0 0.0
    %1011 = vmatprep.subr.mxu0 0.0
    %1012 = vmatpush1.msra.mxu0 0.0
    %1013 = vmatprep.subr.mxu0 0.0
    %1014 = vmatpush1.msra.mxu0 0.0
    %1015 = vmatprep.subr.mxu0 0.0
    %1016 = vmatpush1.msra.mxu0 0.0
    %1017 = vmatprep.subr.mxu0 0.0
    %1018 = vmatpush1.msra.mxu0 0.0
    %1019 = vmatprep.subr.mxu0 0.0
    %1020 = vmatpush1.msra.mxu0 0.0
    %1021 = vmatprep.subr.mxu0 0.0
    %1022 = vmatpush1.msra.mxu0 0.0
    %1023 = vmatprep.subr.mxu0 0.0
    %1024 = vmatpush1.msra.mxu0 0.0
    %1025 = vmatprep.subr.mxu0 0.0
    %1026 = vmatpush1.msra.mxu0 0.0
    %1027 = vmatprep.subr.mxu0 0.0
    %1028 = vmatpush1.msra.mxu0 0.0
    %1029 = vmatprep.subr.mxu0 0.0
    %1030 = vmatpush1.msra.mxu0 0.0
    %1031 = vmatprep.subr.mxu0 0.0
    %1032 = vmatpush1.msra.mxu0 0.0
    %1033 = vmatprep.subr.mxu0 0.0
    %1034 = vmatpush1.msra.mxu0 0.0
    %1035 = vmatprep.subr.mxu0 0.0
    %1036 = vmatpush1.msra.mxu0 0.0
    %1037 = vmatprep.subr.mxu0 0.0
    %1038 = vmatpush1.msra.mxu0 0.0
    %1039 = vmatprep.subr.mxu0 0.0
    %1040 = vmatpush1.msra.mxu0 0.0
    %1041 = vmatprep.subr.mxu0 0.0
    %1042 = vmatpush1.msra.mxu0 0.0
    %1043 = vmatprep.subr.mxu0 0.0
    %1044 = vmatpush1.msra.mxu0 0.0
    %1045 = vmatprep.subr.mxu0 0.0
    %1046 = vmatpush1.msra.mxu0 0.0
    %1047 = vmatprep.subr.mxu0 0.0
    %1048 = vmatpush1.msra.mxu0 0.0
    %1049 = vmatprep.subr.mxu0 0.0
    %1050 = vmatpush1.msra.mxu0 0.0
    %1051 = vmatprep.subr.mxu0 0.0
    %1052 = vmatpush1.msra.mxu0 0.0
    %1053 = vmatprep.subr.mxu0 0.0
    %1054 = vmatpush1.msra.mxu0 0.0
    %1055 = vmatprep.mubr.f32.mxu0 0.0
    %1056 = vmatmul.mubr.f32.gmra.mrb[0].mxu0 %v986
    %v1057 = vpop.f32.mrb[0].mxu0
    %v1058 = vadd.f32 0.0, %v1057
    %v1059 = vpop.f32.mrb[0].mxu0
    %1060 = vmatprep.mubr.f32.mxu0 0.0
    %1061 = vmatmul.mubr.f32.gmra.mrb[0].mxu0 %v989
    %v1062 = vpop.f32.mrb[0].mxu0
    %v1063 = vadd.f32 0.0, %v1062
    %v1064 = vpop.f32.mrb[0].mxu0
    %1065 = vdwg.mxu0
    %1066 = vrot.lane.b32.xlu0 %v219, 104
    %v1067 = vpop.permute.xlu0 %1066
    %1068 = vrot.lane.b32.xlu0 %v224, 104
    %v1069 = vpop.permute.xlu0 %1068
    %1070 = vrot.lane.b32.xlu0 %v313, 104
    %v1071 = vpop.permute.xlu0 %1070
    %1072 = vrot.lane.b32.xlu0 %v318, 104
    %v1073 = vpop.permute.xlu0 %1072
    %v1074 = vsel %vm460, %v1067, 0
    %v1076 = vsel %vm460, %v1069, 0
    %v1078 = vsel %vm460, %v1071, 0
    %v1080 = vsel %vm460, %v1073, 0
    %1082 = vmatprep.subr.mxu0 0.0
    %1083 = vmatpush1.xpose.msra.mxu0 %v1078
    %1084 = vmatprep.subr.mxu0 0.0
    %1085 = vmatpush1.xpose.msra.mxu0 %v1080
    %1086 = vmatprep.subr.mxu0 0.0
    %1087 = vmatpush1.xpose.msra.mxu0 0.0
    %1088 = vmatprep.subr.mxu0 0.0
    %1089 = vmatpush1.xpose.msra.mxu0 0.0
    %1090 = vmatprep.subr.mxu0 0.0
    %1091 = vmatpush1.xpose.msra.mxu0 0.0
    %1092 = vmatprep.subr.mxu0 0.0
    %1093 = vmatpush1.xpose.msra.mxu0 0.0
    %1094 = vmatprep.subr.mxu0 0.0
    %1095 = vmatpush1.xpose.msra.mxu0 0.0
    %1096 = vmatprep.subr.mxu0 0.0
    %1097 = vmatpush1.xpose.msra.mxu0 0.0
    %1098 = vmatprep.subr.mxu0 0.0
    %1099 = vmatpush1.xpose.msra.mxu0 0.0
    %1100 = vmatprep.subr.mxu0 0.0
    %1101 = vmatpush1.xpose.msra.mxu0 0.0
    %1102 = vmatprep.subr.mxu0 0.0
    %1103 = vmatpush1.xpose.msra.mxu0 0.0
    %1104 = vmatprep.subr.mxu0 0.0
    %1105 = vmatpush1.xpose.msra.mxu0 0.0
    %1106 = vmatprep.subr.mxu0 0.0
    %1107 = vmatpush1.xpose.msra.mxu0 0.0
    %1108 = vmatprep.subr.mxu0 0.0
    %1109 = vmatpush1.xpose.msra.mxu0 0.0
    %1110 = vmatprep.subr.mxu0 0.0
    %1111 = vmatpush1.xpose.msra.mxu0 0.0
    %1112 = vmatprep.subr.mxu0 0.0
    %1113 = vmatpush1.xpose.msra.mxu0 0.0
    %1114 = vmatprep.subr.mxu0 0.0
    %1115 = vmatpush1.xpose.msra.mxu0 0.0
    %1116 = vmatprep.subr.mxu0 0.0
    %1117 = vmatpush1.xpose.msra.mxu0 0.0
    %1118 = vmatprep.subr.mxu0 0.0
    %1119 = vmatpush1.xpose.msra.mxu0 0.0
    %1120 = vmatprep.subr.mxu0 0.0
    %1121 = vmatpush1.xpose.msra.mxu0 0.0
    %1122 = vmatprep.subr.mxu0 0.0
    %1123 = vmatpush1.xpose.msra.mxu0 0.0
    %1124 = vmatprep.subr.mxu0 0.0
    %1125 = vmatpush1.xpose.msra.mxu0 0.0
    %1126 = vmatprep.subr.mxu0 0.0
    %1127 = vmatpush1.xpose.msra.mxu0 0.0
    %1128 = vmatprep.subr.mxu0 0.0
    %1129 = vmatpush1.xpose.msra.mxu0 0.0
    %1130 = vmatprep.subr.mxu0 0.0
    %1131 = vmatpush1.xpose.msra.mxu0 0.0
    %1132 = vmatprep.subr.mxu0 0.0
    %1133 = vmatpush1.xpose.msra.mxu0 0.0
    %1134 = vmatprep.subr.mxu0 0.0
    %1135 = vmatpush1.xpose.msra.mxu0 0.0
    %1136 = vmatprep.subr.mxu0 0.0
    %1137 = vmatpush1.xpose.msra.mxu0 0.0
    %1138 = vmatprep.subr.mxu0 0.0
    %1139 = vmatpush1.xpose.msra.mxu0 0.0
    %1140 = vmatprep.subr.mxu0 0.0
    %1141 = vmatpush1.xpose.msra.mxu0 0.0
    %1142 = vmatprep.subr.mxu0 0.0
    %1143 = vmatpush1.xpose.msra.mxu0 0.0
    %1144 = vmatprep.subr.mxu0 0.0
    %1145 = vmatpush1.xpose.msra.mxu0 0.0
    %1146 = vmatprep.mubr.f32.mxu0 0.0
    %1147 = vmatmul.mubr.f32.gmra.mrb[0].mxu0 %v1074
    %v1148 = vpop.f32.mrb[0].mxu0
    %v1149 = vadd.f32 0.0, %v1148
    %v1150 = vpop.f32.mrb[0].mxu0
    %1151 = vmatprep.mubr.f32.mxu0 0.0
    %1152 = vmatmul.mubr.f32.gmra.mrb[0].mxu0 %v1076
    %v1153 = vpop.f32.mrb[0].mxu0
    %v1154 = vadd.f32 0.0, %v1153
    %v1155 = vpop.f32.mrb[0].mxu0
    %1156 = vdwg.mxu0
    %v1157 = vmul.f32 %v1149, 0.35355338
    %v1158 = vmul.f32 %v1154, 0.35355338
    %v1159 = vadd.f32 %v1157, %v458
    %v1160 = vadd.f32 %v1158, %v459
    %v1161 = vsel %vm552, %v1159, -inf
    %1162 = vmax.xlane.f32.xlu0 %v1161
    %v1163 = vpop.xlane.xlu0 %1162
    %v1164 = vsel %vm552, %v1160, -inf
    %1165 = vmax.xlane.f32.xlu0 %v1164
    %v1166 = vpop.xlane.xlu0 %1165
    %v1167 = vsub.f32 %v1159, %v1163
    %v1168 = vsub.f32 %v1160, %v1166
    %v1169 = vmul.f32 %v1167, 1.442695
    %v1170 = vpow.pop %v1169
    %v1171 = vmul.f32 %v1168, 1.442695
    %v1172 = vpow.pop %v1171
    %v1173 = vsel %vm552, %v1170, 0.0
    %1174 = vadd.xlane.f32.xlu0 %v1173
    %v1175 = vpop.xlane.xlu0 %1174
    %v1176 = vsel %vm552, %v1172, 0.0
    %1177 = vadd.xlane.f32.xlu0 %v1176
    %v1178 = vpop.xlane.xlu0 %1177
    %v1179 = vrcp.pop %v1175
    %v1180 = vmul.f32 %v1170, %v1179
    %v1181 = vrcp.pop %v1178
    %v1182 = vmul.f32 %v1172, %v1181
    %1183 = vrot.lane.b32.xlu0 %v407, 104
    %v1184 = vpop.permute.xlu0 %1183
    %1185 = vrot.lane.b32.xlu0 %v412, 104
    %v1186 = vpop.permute.xlu0 %1185
    %v1190 = vsel %vm552, %v1180, 0
    %v1193 = vsel %vm552, %v1182, 0
    %1195 = vmatprep.subr.mxu0 0.0
    %1196 = vmatpush1.msra.mxu0 %v1184
    %1197 = vmatprep.subr.mxu0 0.0
    %1198 = vmatpush1.msra.mxu0 %v1186
    %1199 = vmatprep.subr.mxu0 0.0
    %1200 = vmatpush1.msra.mxu0 0.0
    %1201 = vmatprep.subr.mxu0 0.0
    %1202 = vmatpush1.msra.mxu0 0.0
    %1203 = vmatprep.subr.mxu0 0.0
    %1204 = vmatpush1.msra.mxu0 0.0
    %1205 = vmatprep.subr.mxu0 0.0
    %1206 = vmatpush1.msra.mxu0 0.0
    %1207 = vmatprep.subr.mxu0 0.0
    %1208 = vmatpush1.msra.mxu0 0.0
    %1209 = vmatprep.subr.mxu0 0.0
    %1210 = vmatpush1.msra.mxu0 0.0
    %1211 = vmatprep.subr.mxu0 0.0
    %1212 = vmatpush1.msra.mxu0 0.0
    %1213 = vmatprep.subr.mxu0 0.0
    %1214 = vmatpush1.msra.mxu0 0.0
    %1215 = vmatprep.subr.mxu0 0.0
    %1216 = vmatpush1.msra.mxu0 0.0
    %1217 = vmatprep.subr.mxu0 0.0
    %1218 = vmatpush1.msra.mxu0 0.0
    %1219 = vmatprep.subr.mxu0 0.0
    %1220 = vmatpush1.msra.mxu0 0.0
    %1221 = vmatprep.subr.mxu0 0.0
    %1222 = vmatpush1.msra.mxu0 0.0
    %1223 = vmatprep.subr.mxu0 0.0
    %1224 = vmatpush1.msra.mxu0 0.0
    %1225 = vmatprep.subr.mxu0 0.0
    %1226 = vmatpush1.msra.mxu0 0.0
    %1227 = vmatprep.subr.mxu0 0.0
    %1228 = vmatpush1.msra.mxu0 0.0
    %1229 = vmatprep.subr.mxu0 0.0
    %1230 = vmatpush1.msra.mxu0 0.0
    %1231 = vmatprep.subr.mxu0 0.0
    %1232 = vmatpush1.msra.mxu0 0.0
    %1233 = vmatprep.subr.mxu0 0.0
    %1234 = vmatpush1.msra.mxu0 0.0
    %1235 = vmatprep.subr.mxu0 0.0
    %1236 = vmatpush1.msra.mxu0 0.0
    %1237 = vmatprep.subr.mxu0 0.0
    %1238 = vmatpush1.msra.mxu0 0.0
    %1239 = vmatprep.subr.mxu0 0.0
    %1240 = vmatpush1.msra.mxu0 0.0
    %1241 = vmatprep.subr.mxu0 0.0
    %1242 = vmatpush1.msra.mxu0 0.0
    %1243 = vmatprep.subr.mxu0 0.0
    %1244 = vmatpush1.msra.mxu0 0.0
    %1245 = vmatprep.subr.mxu0 0.0
    %1246 = vmatpush1.msra.mxu0 0.0
    %1247 = vmatprep.subr.mxu0 0.0
    %1248 = vmatpush1.msra.mxu0 0.0
    %1249 = vmatprep.subr.mxu0 0.0
    %1250 = vmatpush1.msra.mxu0 0.0
    %1251 = vmatprep.subr.mxu0 0.0
    %1252 = vmatpush1.msra.mxu0 0.0
    %1253 = vmatprep.subr.mxu0 0.0
    %1254 = vmatpush1.msra.mxu0 0.0
    %1255 = vmatprep.subr.mxu0 0.0
    %1256 = vmatpush1.msra.mxu0 0.0
    %1257 = vmatprep.subr.mxu0 0.0
    %1258 = vmatpush1.msra.mxu0 0.0
    %1259 = vmatprep.mubr.f32.mxu0 0.0
    %1260 = vmatmul.mubr.f32.gmra.mrb[0].mxu0 %v1190
    %v1261 = vpop.f32.mrb[0].mxu0
    %v1262 = vadd.f32 0.0, %v1261
    %v1263 = vpop.f32.mrb[0].mxu0
    %1264 = vmatprep.mubr.f32.mxu0 0.0
    %1265 = vmatmul.mubr.f32.gmra.mrb[0].mxu0 %v1193
    %v1266 = vpop.f32.mrb[0].mxu0
    %v1267 = vadd.f32 0.0, %v1266
    %v1268 = vpop.f32.mrb[0].mxu0
    %1269 = vdwg.mxu0
    %1272 = vrot.lane.b32.xlu0 %v854, 8
    %v1273 = vpop.permute.xlu0 %1272
    %1274 = vrot.lane.b32.xlu0 %v859, 8
    %v1275 = vpop.permute.xlu0 %1274
    %1280 = vrot.lane.b32.xlu0 %v1058, 16
    %v1281 = vpop.permute.xlu0 %1280
    %1282 = vrot.lane.b32.xlu0 %v1063, 16
    %v1283 = vpop.permute.xlu0 %1282
    %1288 = vrot.lane.b32.xlu0 %v1262, 24
    %v1289 = vpop.permute.xlu0 %1288
    %1290 = vrot.lane.b32.xlu0 %v1267, 24
    %v1291 = vpop.permute.xlu0 %1290
    %v1294 = vsel %vm460, %v648, %v1273
    %v1295 = vsel %vm460, %v653, %v1275
    %v1296 = vsel %vm552, %v1294, %v1281
    %v1297 = vsel %vm552, %v1295, %v1283
    %vm1298 = vcmask 195584
    %v1299 = vsel %vm1298, %v1296, %v1289
    %v1300 = vsel %vm1298, %v1297, %v1291
    %v1301 = vld [vmem:[%s9] sm:$0xff]
    %v1302 = vld [vmem:[%s9 + $0x8] sm:$0xff]
    %v1303 = vld [vmem:[%s9 + $0x10] sm:$0xff]
    %v1304 = vld [vmem:[%s9 + $0x18] sm:$0xff]
    %v1305 = vld [vmem:[%s10] sm:$0x1]
    %v1307 = vlaneseq
    %v1308 = vshrl.u32 %v1307, 7
    %v1309 = vsub.s32 0, %v1308
    %v1310 = vrot.slane %v1305, %v1309
    %v1313 = vsel %vm145, %v1299, 0
    %v1316 = vsel %vm145, %v1300, 0
    %1318 = vmatprep.subr.mxu0 0.0
    %1319 = vmatpush1.msra.mxu0 %v1301
    %1320 = vmatprep.subr.mxu0 0.0
    %1321 = vmatpush1.msra.mxu0 %v1302
    %1322 = vmatprep.subr.mxu0 0.0
    %1323 = vmatpush1.msra.mxu0 %v1303
    %1324 = vmatprep.subr.mxu0 0.0
    %1325 = vmatpush1.msra.mxu0 %v1304
    %1326 = vmatprep.subr.mxu0 0.0
    %1327 = vmatpush1.msra.mxu0 0.0
    %1328 = vmatprep.subr.mxu0 0.0
    %1329 = vmatpush1.msra.mxu0 0.0
    %1330 = vmatprep.subr.mxu0 0.0
    %1331 = vmatpush1.msra.mxu0 0.0
    %1332 = vmatprep.subr.mxu0 0.0
    %1333 = vmatpush1.msra.mxu0 0.0
    %1334 = vmatprep.subr.mxu0 0.0
    %1335 = vmatpush1.msra.mxu0 0.0
    %1336 = vmatprep.subr.mxu0 0.0
    %1337 = vmatpush1.msra.mxu0 0.0
    %1338 = vmatprep.subr.mxu0 0.0
    %1339 = vmatpush1.msra.mxu0 0.0
    %1340 = vmatprep.subr.mxu0 0.0
    %1341 = vmatpush1.msra.mxu0 0.0
    %1342 = vmatprep.subr.mxu0 0.0
    %1343 = vmatpush1.msra.mxu0 0.0
    %1344 = vmatprep.subr.mxu0 0.0
    %1345 = vmatpush1.msra.mxu0 0.0
    %1346 = vmatprep.subr.mxu0 0.0
    %1347 = vmatpush1.msra.mxu0 0.0
    %1348 = vmatprep.subr.mxu0 0.0
    %1349 = vmatpush1.msra.mxu0 0.0
    %1350 = vmatprep.subr.mxu0 0.0
    %1351 = vmatpush1.msra.mxu0 0.0
    %1352 = vmatprep.subr.mxu0 0.0
    %1353 = vmatpush1.msra.mxu0 0.0
    %1354 = vmatprep.subr.mxu0 0.0
    %1355 = vmatpush1.msra.mxu0 0.0
    %1356 = vmatprep.subr.mxu0 0.0
    %1357 = vmatpush1.msra.mxu0 0.0
    %1358 = vmatprep.subr.mxu0 0.0
    %1359 = vmatpush1.msra.mxu0 0.0
    %1360 = vmatprep.subr.mxu0 0.0
    %1361 = vmatpush1.msra.mxu0 0.0
    %1362 = vmatprep.subr.mxu0 0.0
    %1363 = vmatpush1.msra.mxu0 0.0
    %1364 = vmatprep.subr.mxu0 0.0
    %1365 = vmatpush1.msra.mxu0 0.0
    %1366 = vmatprep.subr.mxu0 0.0
    %1367 = vmatpush1.msra.mxu0 0.0
    %1368 = vmatprep.subr.mxu0 0.0
    %1369 = vmatpush1.msra.mxu0 0.0
    %1370 = vmatprep.subr.mxu0 0.0
    %1371 = vmatpush1.msra.mxu0 0.0
    %1372 = vmatprep.subr.mxu0 0.0
    %1373 = vmatpush1.msra.mxu0 0.0
    %1374 = vmatprep.subr.mxu0 0.0
    %1375 = vmatpush1.msra.mxu0 0.0
    %1376 = vmatprep.subr.mxu0 0.0
    %1377 = vmatpush1.msra.mxu0 0.0
    %1378 = vmatprep.subr.mxu0 0.0
    %1379 = vmatpush1.msra.mxu0 0.0
    %1380 = vmatprep.subr.mxu0 0.0
    %1381 = vmatpush1.msra.mxu0 0.0
    %1382 = vmatprep.mubr.f32.mxu0 0.0
    %1383 = vmatmul.mubr.f32.gmra.mrb[0].mxu0 %v1313
    %v1384 = vpop.f32.mrb[0].mxu0
    %v1385 = vadd.f32 %v1310, %v1384
    %v1386 = vpop.f32.mrb[0].mxu0
    %1387 = vmatprep.mubr.f32.mxu0 0.0
    %1388 = vmatmul.mubr.f32.gmra.mrb[0].mxu0 %v1316
    %v1389 = vpop.f32.mrb[0].mxu0
    %v1390 = vadd.f32 %v1310, %v1389
    %v1391 = vpop.f32.mrb[0].mxu0
    %1392 = vdwg.mxu0
    %1393 = vst.msk [vmem:[#allocation14] sm:$0xff] %vm145, %v1385
    %1394 = vst.msk [vmem:[#allocation14 + $0x8] sm:$0xff] %vm145, %v1390
    // Predicated region
    $region74: #{tpu_custom_call.1} parent=1 // pred_check
      _
    $region75: #{tpu_custom_call.1} parent=1 // pred_check_branch
      %1396 = sbr.rel (0) target = $region77
    $region76: #{tpu_custom_call.1} parent=1 // pred_region
      %s1398 = ssub.s32 256, 256
      %1399 = vsyncadd [#allocation4], %s1398
      %s1400 = sshll.u32 [#allocation14], 4
      %s1401 = int_to_ptr.vmem [resolvable:$true] %s1400
      %1406 = dma.vmem_to_hbm [thread:$0]  %s1401, 256, %s11, [#allocation4], 128, 128, 8
    $region77: #{tpu_custom_call.1} parent=1 // pred_fallthru
      _
    // Predicated region
    $region78: #{tpu_custom_call.1} parent=1 // pred_check
      _
    $region79: #{tpu_custom_call.1} parent=1 // pred_check_branch
      %1408 = sbr.rel (0) target = $region81
    $region80: #{tpu_custom_call.1} parent=1 // pred_region
      %1409 = dma.done [#allocation4], 256
    $region81: #{tpu_custom_call.1} parent=1 // pred_fallthru
      _
    %1410 = vsyncpa [#allocation3], 1
    %1411 = vsyncpa [#allocation6], 1
    %1412 = vsyncpa [#allocation9], 1
    %1413 = vsyncpa [#allocation12], 1
    %1414 = vsyncpa [#allocation4], 1

</llo_original>
